<compile_context>
chip_gen: v7x
topology: tpu7x:2x2x1
jax: 0.10.0
libtpu: 0.0.40
codegen_flags: <defaults>
</compile_context>

<pallas_src>
import jax
import jax.numpy as jnp
from jax.experimental import pallas as pl
from jax.experimental.pallas import tpu as pltpu


def _make_kernel(eps, tile, s_pad, h):
    inv_h = 1.0 / float(h)

    def emb_ln_kernel(ids_ref,                # scalar-prefetch: flat token ids (SMEM)
                      wemb_hbm,               # word embedding table, raw HBM ref
                      pos_ref,                # contiguous position-emb tile (TILE, H)
                      gamma_ref, beta_ref,    # LayerNorm params, (1, H)
                      o_ref,                  # output tile (TILE, H)
                      gbuf,                   # VMEM gather buffer (2, TILE, H)
                      sems):                  # DMA semaphores (2,)
        j = pl.program_id(0)                  # sequence-tile index (outer, parallel)
        b = pl.program_id(1)                  # batch index       (inner, arbitrary)
        nb = pl.num_programs(1)
        slot = b & 1

        def issue_tile(base, dst_slot):
            # Issue all `tile` row gathers on one semaphore -> deep DMA pipeline.
            def body(r, carry):
                row = ids_ref[base + r]
                pltpu.make_async_copy(wemb_hbm.at[row],
                                      gbuf.at[dst_slot, r],
                                      sems.at[dst_slot]).start()
                return carry
            jax.lax.fori_loop(0, tile, body, 0, unroll=8)

        def wait_tile(dst_slot):
            # Every row DMA has identical size (H elems); N same-sized waits on
            # the shared semaphore complete exactly the N issued row copies.
            def body(r, carry):
                pltpu.make_async_copy(wemb_hbm.at[0],
                                      gbuf.at[dst_slot, 0],
                                      sems.at[dst_slot]).wait()
                return carry
            jax.lax.fori_loop(0, tile, body, 0, unroll=8)

        # Prologue: first inner step of this outer tile -> gather current now.
        @pl.when(b == 0)
        def _():
            issue_tile(j * tile, 0)

        # Cross-step prefetch: issue next inner step's gathers BEFORE waiting.
        # (Inner axis is 'arbitrary' -> sequential on one core, so (j, b+1) is
        #  guaranteed to be this core's next step; no dangling DMAs.)
        @pl.when(b + 1 < nb)
        def _():
            issue_tile((b + 1) * s_pad + j * tile, 1 - slot)

        # Wait for the current slab (issued last step, or in the prologue).
        wait_tile(slot)

        # Add + fused single-pass LayerNorm (f32 math, cast only at the store).
        x = gbuf[slot].astype(jnp.float32) + pos_ref[...].astype(jnp.float32)
        s1 = jnp.sum(x, axis=-1, keepdims=True)
        s2 = jnp.sum(x * x, axis=-1, keepdims=True)
        mean = s1 * inv_h
        var = jnp.maximum(s2 * inv_h - mean * mean, 0.0)
        inv = jax.lax.rsqrt(var + eps)
        y = (x - mean) * inv * gamma_ref[...].astype(jnp.float32) \
            + beta_ref[...].astype(jnp.float32)
        o_ref[...] = y.astype(o_ref.dtype)

    return emb_ln_kernel


def bert_generation_embeddings(input_ids, word_emb, pos_emb, gamma, beta,
                               past_key_values_length=0, eps=1e-12,
                               tile=256, out_dtype=None):
    """Pallas implementation of BertGenerationEmbeddings.forward (eval mode)."""
    B, S = input_ids.shape
    V, H = word_emb.shape
    if out_dtype is None:
        out_dtype = word_emb.dtype

    # Positions must stay inside the position-embedding table (dynamic_slice
    # would otherwise silently clamp and return shifted embeddings).
    if isinstance(past_key_values_length, int):
        assert past_key_values_length + S <= pos_emb.shape[0], \
            "past_key_values_length + seq_len exceeds max_position_embeddings"

    # Tile size: multiple of 8 sublanes, no larger than S rounded up to 8.
    s_round8 = ((S + 7) // 8) * 8
    tile = max(8, (min(int(tile), s_round8) // 8) * 8)
    # v7x has 2 TensorCores: prefer >= 2 outer ('parallel') grid points.
    if s_round8 // tile < 2 and s_round8 >= 16:
        tile = max(8, -(-(s_round8 // 2) // 8) * 8)
    num_tiles = pl.cdiv(S, tile)
    s_pad = num_tiles * tile

    # Token ids: pad sequence to s_pad (pad rows are dropped at the end).
    ids = input_ids.astype(jnp.int32)
    if s_pad != S:
        ids = jnp.pad(ids, ((0, 0), (0, s_pad - S)))
    flat_ids = ids.reshape(-1)                                    # (B * s_pad,)

    # Position embeddings: contiguous slice starting at past_key_values_length.
    pos_used = jax.lax.dynamic_slice(pos_emb, (past_key_values_length, 0), (S, H))
    if s_pad != S:
        pos_used = jnp.pad(pos_used, ((0, s_pad - S), (0, 0)))

    kernel = _make_kernel(eps, tile, s_pad, H)

    # Explicit VMEM budget: 2x gather buffer + 2x pos + 2x out double buffers
    # plus f32 LN temporaries; capped at 64 MiB (v7x physical ceiling).
    w_sz = jnp.dtype(word_emb.dtype).itemsize
    p_sz = jnp.dtype(pos_emb.dtype).itemsize
    o_sz = jnp.dtype(out_dtype).itemsize
    vmem_est = tile * H * (2 * w_sz + 2 * p_sz + 2 * o_sz + 6 * 4)
    vmem_limit = int(min(max(vmem_est + (8 << 20), 32 << 20), 64 << 20))

    out_flat = pl.pallas_call(
        kernel,
        out_shape=jax.ShapeDtypeStruct((B * s_pad, H), out_dtype),
        grid_spec=pltpu.PrefetchScalarGridSpec(
            num_scalar_prefetch=1,
            grid=(num_tiles, B),                     # batch innermost -> pos reuse
            in_specs=[
                # word-embedding table stays in HBM; gathered manually in-kernel.
                pl.BlockSpec(memory_space=pl.ANY),
                # contiguous position-embedding tile (constant across inner b).
                pl.BlockSpec((tile, H), lambda j, b, ids: (j, 0)),
                # LayerNorm weight / bias, single (1, H) block (loaded once).
                pl.BlockSpec((1, H), lambda j, b, ids: (0, 0)),
                pl.BlockSpec((1, H), lambda j, b, ids: (0, 0)),
            ],
            out_specs=pl.BlockSpec(
                (tile, H), lambda j, b, ids, nt=num_tiles: (b * nt + j, 0)),
            scratch_shapes=[
                pltpu.VMEM((2, tile, H), word_emb.dtype),   # double-buffered gather
                pltpu.SemaphoreType.DMA((2,)),              # one sem per slot
            ],
        ),
        compiler_params=pltpu.CompilerParams(
            dimension_semantics=("parallel", "arbitrary"),
            vmem_limit_bytes=vmem_limit),
    )(flat_ids, word_emb, pos_used, gamma.reshape(1, H), beta.reshape(1, H))

    out = out_flat.reshape(B, s_pad, H)
    if s_pad != S:
        out = out[:, :S, :]
    return out


def _reference(input_ids, word_emb, pos_emb, gamma, beta,
               past_key_values_length=0, eps=1e-12):
    B, S = input_ids.shape
    position_ids = jnp.arange(past_key_values_length,
                              past_key_values_length + S)
    we = jnp.take(word_emb, input_ids, axis=0)
    pe = jnp.take(pos_emb, position_ids, axis=0)[None, :, :]
    x = we + pe
    mean = jnp.mean(x, axis=-1, keepdims=True)
    var = jnp.mean((x - mean) ** 2, axis=-1, keepdims=True)
    return (x - mean) / jnp.sqrt(var + eps) * gamma + beta


if __name__ == "__main__":
    # Small config consistent with the module's __init__.
    vocab_size = 64
    hidden_size = 128
    max_position_embeddings = 64
    pad_token_id = 0
    layer_norm_eps = 1e-12

    key = jax.random.PRNGKey(0)
    k_w, k_p, k_g, k_b, k_ids, k_ids2 = jax.random.split(key, 6)

    word_emb = jax.random.normal(k_w, (vocab_size, hidden_size), jnp.float32) * 0.02
    # nn.Embedding(padding_idx=pad_token_id): padding row is zero-initialized.
    word_emb = word_emb.at[pad_token_id].set(0.0)
    pos_emb = jax.random.normal(k_p, (max_position_embeddings, hidden_size),
                                jnp.float32) * 0.02
    gamma = 1.0 + 0.1 * jax.random.normal(k_g, (hidden_size,), jnp.float32)
    beta = 0.1 * jax.random.normal(k_b, (hidden_size,), jnp.float32)

    # Case 1: batch=2, seq=8, no past key values.
    B, S = 2, 8
    input_ids = jax.random.randint(k_ids, (B, S), 0, vocab_size, dtype=jnp.int32)
    out = bert_generation_embeddings(input_ids, word_emb, pos_emb, gamma, beta,
                                     past_key_values_length=0,
                                     eps=layer_norm_eps)
    out = jax.block_until_ready(out)
    ref = _reference(input_ids, word_emb, pos_emb, gamma, beta,
                     past_key_values_length=0, eps=layer_norm_eps)
    assert out.shape == (B, S, hidden_size)
    assert jnp.allclose(out, ref, atol=5e-5, rtol=5e-5), "mismatch vs reference (case 1)"

    # Case 2: non-multiple-of-8 sequence + nonzero past_key_values_length
    # (exercises padding, multi-tile grid, cross-step prefetch, position offset).
    B2, S2, past_kv = 2, 20, 5
    input_ids2 = jax.random.randint(k_ids2, (B2, S2), 0, vocab_size, dtype=jnp.int32)
    out2 = bert_generation_embeddings(input_ids2, word_emb, pos_emb, gamma, beta,
                                      past_key_values_length=past_kv,
                                      eps=layer_norm_eps)
    out2 = jax.block_until_ready(out2)
    ref2 = _reference(input_ids2, word_emb, pos_emb, gamma, beta,
                      past_key_values_length=past_kv, eps=layer_norm_eps)
    assert out2.shape == (B2, S2, hidden_size)
    assert jnp.allclose(out2, ref2, atol=5e-5, rtol=5e-5), "mismatch vs reference (case 2)"

    print("KERNEL_OK")
</pallas_src>

<mosaic_0001>
module attributes {stable_mosaic.version = 11 : i64} {
  func.func @emb_ln_kernel(%arg0: i32, %arg1: i32, %arg2: memref<16xi32, #tpu.memory_space<smem>>, %arg3: memref<64x128xf32, #tpu.memory_space<any>>, %arg4: memref<8x128xf32, #tpu.memory_space<vmem>>, %arg5: memref<1x128xf32, #tpu.memory_space<vmem>>, %arg6: memref<1x128xf32, #tpu.memory_space<vmem>>, %arg7: memref<8x128xf32, #tpu.memory_space<vmem>>, %arg8: memref<2x8x128xf32, #tpu.memory_space<vmem>>, %arg9: memref<2x!tpu.dma_semaphore, #tpu.memory_space<semaphore_mem>>) attributes {dimension_semantics = [#tpu.dimension_semantics<parallel>, #tpu.dimension_semantics<arbitrary>], iteration_bounds = array<i64: 1, 2>, scalar_prefetch = 1 : i64, scratch_operands = 2 : i64, tpu.core_type = #tpu.core_type<tc>, window_params = [{}, {transform_indices = @transform_1, window_bounds = array<i64: 8, 128>}, {pipeline_mode = #tpu.pipeline_mode<synchronous>, transform_indices = @transform_2, window_bounds = array<i64: 1, 128>}, {pipeline_mode = #tpu.pipeline_mode<synchronous>, transform_indices = @transform_3, window_bounds = array<i64: 1, 128>}, {transform_indices = @transform_4, window_bounds = array<i64: 8, 128>}]} {
    %c1_i32 = arith.constant 1 : i32
    %0 = arith.andi %arg1, %c1_i32 : i32
    %c0_i32 = arith.constant 0 : i32
    %1 = arith.cmpi eq, %arg1, %c0_i32 : i32
    %2 = arith.extui %1 : i1 to i32
    %c0_i32_0 = arith.constant 0 : i32
    %3 = arith.cmpi ne, %2, %c0_i32_0 : i32
    scf.if %3 {
      %c8_i32 = arith.constant 8 : i32
      %88 = arith.muli %arg0, %c8_i32 : i32
      %c0_i32_52 = arith.constant 0 : i32
      %89 = arith.addi %88, %c0_i32_52 : i32
      %90 = arith.index_cast %89 : i32 to index
      %91 = memref.load %arg2[%90] : memref<16xi32, #tpu.memory_space<smem>>
      %c0_i32_53 = arith.constant 0 : i32
      %c0_i32_54 = arith.constant 0 : i32
      %c0_i32_55 = arith.constant 0 : i32
      %92 = tpu.memref_slice %arg3[%91, %c0_i32_55] : memref<64x128xf32, #tpu.memory_space<any>> -> memref<1x128xf32, #tpu.memory_space<any>>
      %93 = tpu.memref_squeeze %92 : memref<1x128xf32, #tpu.memory_space<any>> -> memref<128xf32, #tpu.memory_space<any>>
      %c0_i32_56 = arith.constant 0 : i32
      %94 = tpu.memref_slice %arg8[%c0_i32_53, %c0_i32_52, %c0_i32_56] : memref<2x8x128xf32, #tpu.memory_space<vmem>> -> memref<1x1x128xf32, #tpu.memory_space<vmem>>
      %95 = tpu.memref_squeeze %94 : memref<1x1x128xf32, #tpu.memory_space<vmem>> -> memref<128xf32, #tpu.memory_space<vmem>>
      %96 = tpu.memref_slice %arg9[%c0_i32_54] : memref<2x!tpu.dma_semaphore, #tpu.memory_space<semaphore_mem>> -> memref<1x!tpu.dma_semaphore, #tpu.memory_space<semaphore_mem>>
      %97 = tpu.memref_squeeze %96 : memref<1x!tpu.dma_semaphore, #tpu.memory_space<semaphore_mem>> -> memref<!tpu.dma_semaphore, #tpu.memory_space<semaphore_mem>>
      tpu.enqueue_dma source(%93 : memref<128xf32, #tpu.memory_space<any>>) target(%95 : memref<128xf32, #tpu.memory_space<vmem>>) target_semaphore(%97 : memref<!tpu.dma_semaphore, #tpu.memory_space<semaphore_mem>>)
      %c1_i32_57 = arith.constant 1 : i32
      %98 = arith.addi %88, %c1_i32_57 : i32
      %99 = arith.index_cast %98 : i32 to index
      %100 = memref.load %arg2[%99] : memref<16xi32, #tpu.memory_space<smem>>
      %c0_i32_58 = arith.constant 0 : i32
      %c0_i32_59 = arith.constant 0 : i32
      %c0_i32_60 = arith.constant 0 : i32
      %101 = tpu.memref_slice %arg3[%100, %c0_i32_60] : memref<64x128xf32, #tpu.memory_space<any>> -> memref<1x128xf32, #tpu.memory_space<any>>
      %102 = tpu.memref_squeeze %101 : memref<1x128xf32, #tpu.memory_space<any>> -> memref<128xf32, #tpu.memory_space<any>>
      %c0_i32_61 = arith.constant 0 : i32
      %103 = tpu.memref_slice %arg8[%c0_i32_58, %c1_i32_57, %c0_i32_61] : memref<2x8x128xf32, #tpu.memory_space<vmem>> -> memref<1x1x128xf32, #tpu.memory_space<vmem>>
      %104 = tpu.memref_squeeze %103 : memref<1x1x128xf32, #tpu.memory_space<vmem>> -> memref<128xf32, #tpu.memory_space<vmem>>
      %105 = tpu.memref_slice %arg9[%c0_i32_59] : memref<2x!tpu.dma_semaphore, #tpu.memory_space<semaphore_mem>> -> memref<1x!tpu.dma_semaphore, #tpu.memory_space<semaphore_mem>>
      %106 = tpu.memref_squeeze %105 : memref<1x!tpu.dma_semaphore, #tpu.memory_space<semaphore_mem>> -> memref<!tpu.dma_semaphore, #tpu.memory_space<semaphore_mem>>
      tpu.enqueue_dma source(%102 : memref<128xf32, #tpu.memory_space<any>>) target(%104 : memref<128xf32, #tpu.memory_space<vmem>>) target_semaphore(%106 : memref<!tpu.dma_semaphore, #tpu.memory_space<semaphore_mem>>)
      %c2_i32_62 = arith.constant 2 : i32
      %107 = arith.addi %88, %c2_i32_62 : i32
      %108 = arith.index_cast %107 : i32 to index
      %109 = memref.load %arg2[%108] : memref<16xi32, #tpu.memory_space<smem>>
      %c0_i32_63 = arith.constant 0 : i32
      %c0_i32_64 = arith.constant 0 : i32
      %c0_i32_65 = arith.constant 0 : i32
      %110 = tpu.memref_slice %arg3[%109, %c0_i32_65] : memref<64x128xf32, #tpu.memory_space<any>> -> memref<1x128xf32, #tpu.memory_space<any>>
      %111 = tpu.memref_squeeze %110 : memref<1x128xf32, #tpu.memory_space<any>> -> memref<128xf32, #tpu.memory_space<any>>
      %c0_i32_66 = arith.constant 0 : i32
      %112 = tpu.memref_slice %arg8[%c0_i32_63, %c2_i32_62, %c0_i32_66] : memref<2x8x128xf32, #tpu.memory_space<vmem>> -> memref<1x1x128xf32, #tpu.memory_space<vmem>>
      %113 = tpu.memref_squeeze %112 : memref<1x1x128xf32, #tpu.memory_space<vmem>> -> memref<128xf32, #tpu.memory_space<vmem>>
      %114 = tpu.memref_slice %arg9[%c0_i32_64] : memref<2x!tpu.dma_semaphore, #tpu.memory_space<semaphore_mem>> -> memref<1x!tpu.dma_semaphore, #tpu.memory_space<semaphore_mem>>
      %115 = tpu.memref_squeeze %114 : memref<1x!tpu.dma_semaphore, #tpu.memory_space<semaphore_mem>> -> memref<!tpu.dma_semaphore, #tpu.memory_space<semaphore_mem>>
      tpu.enqueue_dma source(%111 : memref<128xf32, #tpu.memory_space<any>>) target(%113 : memref<128xf32, #tpu.memory_space<vmem>>) target_semaphore(%115 : memref<!tpu.dma_semaphore, #tpu.memory_space<semaphore_mem>>)
      %c3_i32_67 = arith.constant 3 : i32
      %116 = arith.addi %88, %c3_i32_67 : i32
      %117 = arith.index_cast %116 : i32 to index
      %118 = memref.load %arg2[%117] : memref<16xi32, #tpu.memory_space<smem>>
      %c0_i32_68 = arith.constant 0 : i32
      %c0_i32_69 = arith.constant 0 : i32
      %c0_i32_70 = arith.constant 0 : i32
      %119 = tpu.memref_slice %arg3[%118, %c0_i32_70] : memref<64x128xf32, #tpu.memory_space<any>> -> memref<1x128xf32, #tpu.memory_space<any>>
      %120 = tpu.memref_squeeze %119 : memref<1x128xf32, #tpu.memory_space<any>> -> memref<128xf32, #tpu.memory_space<any>>
      %c0_i32_71 = arith.constant 0 : i32
      %121 = tpu.memref_slice %arg8[%c0_i32_68, %c3_i32_67, %c0_i32_71] : memref<2x8x128xf32, #tpu.memory_space<vmem>> -> memref<1x1x128xf32, #tpu.memory_space<vmem>>
      %122 = tpu.memref_squeeze %121 : memref<1x1x128xf32, #tpu.memory_space<vmem>> -> memref<128xf32, #tpu.memory_space<vmem>>
      %123 = tpu.memref_slice %arg9[%c0_i32_69] : memref<2x!tpu.dma_semaphore, #tpu.memory_space<semaphore_mem>> -> memref<1x!tpu.dma_semaphore, #tpu.memory_space<semaphore_mem>>
      %124 = tpu.memref_squeeze %123 : memref<1x!tpu.dma_semaphore, #tpu.memory_space<semaphore_mem>> -> memref<!tpu.dma_semaphore, #tpu.memory_space<semaphore_mem>>
      tpu.enqueue_dma source(%120 : memref<128xf32, #tpu.memory_space<any>>) target(%122 : memref<128xf32, #tpu.memory_space<vmem>>) target_semaphore(%124 : memref<!tpu.dma_semaphore, #tpu.memory_space<semaphore_mem>>)
      %c4_i32_72 = arith.constant 4 : i32
      %125 = arith.addi %88, %c4_i32_72 : i32
      %126 = arith.index_cast %125 : i32 to index
      %127 = memref.load %arg2[%126] : memref<16xi32, #tpu.memory_space<smem>>
      %c0_i32_73 = arith.constant 0 : i32
      %c0_i32_74 = arith.constant 0 : i32
      %c0_i32_75 = arith.constant 0 : i32
      %128 = tpu.memref_slice %arg3[%127, %c0_i32_75] : memref<64x128xf32, #tpu.memory_space<any>> -> memref<1x128xf32, #tpu.memory_space<any>>
      %129 = tpu.memref_squeeze %128 : memref<1x128xf32, #tpu.memory_space<any>> -> memref<128xf32, #tpu.memory_space<any>>
      %c0_i32_76 = arith.constant 0 : i32
      %130 = tpu.memref_slice %arg8[%c0_i32_73, %c4_i32_72, %c0_i32_76] : memref<2x8x128xf32, #tpu.memory_space<vmem>> -> memref<1x1x128xf32, #tpu.memory_space<vmem>>
      %131 = tpu.memref_squeeze %130 : memref<1x1x128xf32, #tpu.memory_space<vmem>> -> memref<128xf32, #tpu.memory_space<vmem>>
      %132 = tpu.memref_slice %arg9[%c0_i32_74] : memref<2x!tpu.dma_semaphore, #tpu.memory_space<semaphore_mem>> -> memref<1x!tpu.dma_semaphore, #tpu.memory_space<semaphore_mem>>
      %133 = tpu.memref_squeeze %132 : memref<1x!tpu.dma_semaphore, #tpu.memory_space<semaphore_mem>> -> memref<!tpu.dma_semaphore, #tpu.memory_space<semaphore_mem>>
      tpu.enqueue_dma source(%129 : memref<128xf32, #tpu.memory_space<any>>) target(%131 : memref<128xf32, #tpu.memory_space<vmem>>) target_semaphore(%133 : memref<!tpu.dma_semaphore, #tpu.memory_space<semaphore_mem>>)
      %c5_i32_77 = arith.constant 5 : i32
      %134 = arith.addi %88, %c5_i32_77 : i32
      %135 = arith.index_cast %134 : i32 to index
      %136 = memref.load %arg2[%135] : memref<16xi32, #tpu.memory_space<smem>>
      %c0_i32_78 = arith.constant 0 : i32
      %c0_i32_79 = arith.constant 0 : i32
      %c0_i32_80 = arith.constant 0 : i32
      %137 = tpu.memref_slice %arg3[%136, %c0_i32_80] : memref<64x128xf32, #tpu.memory_space<any>> -> memref<1x128xf32, #tpu.memory_space<any>>
      %138 = tpu.memref_squeeze %137 : memref<1x128xf32, #tpu.memory_space<any>> -> memref<128xf32, #tpu.memory_space<any>>
      %c0_i32_81 = arith.constant 0 : i32
      %139 = tpu.memref_slice %arg8[%c0_i32_78, %c5_i32_77, %c0_i32_81] : memref<2x8x128xf32, #tpu.memory_space<vmem>> -> memref<1x1x128xf32, #tpu.memory_space<vmem>>
      %140 = tpu.memref_squeeze %139 : memref<1x1x128xf32, #tpu.memory_space<vmem>> -> memref<128xf32, #tpu.memory_space<vmem>>
      %141 = tpu.memref_slice %arg9[%c0_i32_79] : memref<2x!tpu.dma_semaphore, #tpu.memory_space<semaphore_mem>> -> memref<1x!tpu.dma_semaphore, #tpu.memory_space<semaphore_mem>>
      %142 = tpu.memref_squeeze %141 : memref<1x!tpu.dma_semaphore, #tpu.memory_space<semaphore_mem>> -> memref<!tpu.dma_semaphore, #tpu.memory_space<semaphore_mem>>
      tpu.enqueue_dma source(%138 : memref<128xf32, #tpu.memory_space<any>>) target(%140 : memref<128xf32, #tpu.memory_space<vmem>>) target_semaphore(%142 : memref<!tpu.dma_semaphore, #tpu.memory_space<semaphore_mem>>)
      %c6_i32_82 = arith.constant 6 : i32
      %143 = arith.addi %88, %c6_i32_82 : i32
      %144 = arith.index_cast %143 : i32 to index
      %145 = memref.load %arg2[%144] : memref<16xi32, #tpu.memory_space<smem>>
      %c0_i32_83 = arith.constant 0 : i32
      %c0_i32_84 = arith.constant 0 : i32
      %c0_i32_85 = arith.constant 0 : i32
      %146 = tpu.memref_slice %arg3[%145, %c0_i32_85] : memref<64x128xf32, #tpu.memory_space<any>> -> memref<1x128xf32, #tpu.memory_space<any>>
      %147 = tpu.memref_squeeze %146 : memref<1x128xf32, #tpu.memory_space<any>> -> memref<128xf32, #tpu.memory_space<any>>
      %c0_i32_86 = arith.constant 0 : i32
      %148 = tpu.memref_slice %arg8[%c0_i32_83, %c6_i32_82, %c0_i32_86] : memref<2x8x128xf32, #tpu.memory_space<vmem>> -> memref<1x1x128xf32, #tpu.memory_space<vmem>>
      %149 = tpu.memref_squeeze %148 : memref<1x1x128xf32, #tpu.memory_space<vmem>> -> memref<128xf32, #tpu.memory_space<vmem>>
      %150 = tpu.memref_slice %arg9[%c0_i32_84] : memref<2x!tpu.dma_semaphore, #tpu.memory_space<semaphore_mem>> -> memref<1x!tpu.dma_semaphore, #tpu.memory_space<semaphore_mem>>
      %151 = tpu.memref_squeeze %150 : memref<1x!tpu.dma_semaphore, #tpu.memory_space<semaphore_mem>> -> memref<!tpu.dma_semaphore, #tpu.memory_space<semaphore_mem>>
      tpu.enqueue_dma source(%147 : memref<128xf32, #tpu.memory_space<any>>) target(%149 : memref<128xf32, #tpu.memory_space<vmem>>) target_semaphore(%151 : memref<!tpu.dma_semaphore, #tpu.memory_space<semaphore_mem>>)
      %c7_i32_87 = arith.constant 7 : i32
      %152 = arith.addi %88, %c7_i32_87 : i32
      %153 = arith.index_cast %152 : i32 to index
      %154 = memref.load %arg2[%153] : memref<16xi32, #tpu.memory_space<smem>>
      %c0_i32_88 = arith.constant 0 : i32
      %c0_i32_89 = arith.constant 0 : i32
      %c0_i32_90 = arith.constant 0 : i32
      %155 = tpu.memref_slice %arg3[%154, %c0_i32_90] : memref<64x128xf32, #tpu.memory_space<any>> -> memref<1x128xf32, #tpu.memory_space<any>>
      %156 = tpu.memref_squeeze %155 : memref<1x128xf32, #tpu.memory_space<any>> -> memref<128xf32, #tpu.memory_space<any>>
      %c0_i32_91 = arith.constant 0 : i32
      %157 = tpu.memref_slice %arg8[%c0_i32_88, %c7_i32_87, %c0_i32_91] : memref<2x8x128xf32, #tpu.memory_space<vmem>> -> memref<1x1x128xf32, #tpu.memory_space<vmem>>
      %158 = tpu.memref_squeeze %157 : memref<1x1x128xf32, #tpu.memory_space<vmem>> -> memref<128xf32, #tpu.memory_space<vmem>>
      %159 = tpu.memref_slice %arg9[%c0_i32_89] : memref<2x!tpu.dma_semaphore, #tpu.memory_space<semaphore_mem>> -> memref<1x!tpu.dma_semaphore, #tpu.memory_space<semaphore_mem>>
      %160 = tpu.memref_squeeze %159 : memref<1x!tpu.dma_semaphore, #tpu.memory_space<semaphore_mem>> -> memref<!tpu.dma_semaphore, #tpu.memory_space<semaphore_mem>>
      tpu.enqueue_dma source(%156 : memref<128xf32, #tpu.memory_space<any>>) target(%158 : memref<128xf32, #tpu.memory_space<vmem>>) target_semaphore(%160 : memref<!tpu.dma_semaphore, #tpu.memory_space<semaphore_mem>>)
      %c8_i32_92 = arith.constant 8 : i32
    } else {
    }
    %c1_i32_1 = arith.constant 1 : i32
    %4 = arith.addi %arg1, %c1_i32_1 : i32
    %c2_i32 = arith.constant 2 : i32
    %5 = arith.cmpi slt, %4, %c2_i32 : i32
    %6 = arith.extui %5 : i1 to i32
    %c0_i32_2 = arith.constant 0 : i32
    %7 = arith.cmpi ne, %6, %c0_i32_2 : i32
    scf.if %7 {
      %c1_i32_52 = arith.constant 1 : i32
      %88 = arith.addi %arg1, %c1_i32_52 : i32
      %c8_i32 = arith.constant 8 : i32
      %89 = arith.muli %88, %c8_i32 : i32
      %c8_i32_53 = arith.constant 8 : i32
      %90 = arith.muli %arg0, %c8_i32_53 : i32
      %91 = arith.addi %89, %90 : i32
      %c1_i32_54 = arith.constant 1 : i32
      %92 = arith.subi %c1_i32_54, %0 : i32
      %c0_i32_55 = arith.constant 0 : i32
      %93 = arith.addi %91, %c0_i32_55 : i32
      %94 = arith.index_cast %93 : i32 to index
      %95 = memref.load %arg2[%94] : memref<16xi32, #tpu.memory_space<smem>>
      %c0_i32_56 = arith.constant 0 : i32
      %96 = tpu.memref_slice %arg3[%95, %c0_i32_56] : memref<64x128xf32, #tpu.memory_space<any>> -> memref<1x128xf32, #tpu.memory_space<any>>
      %97 = tpu.memref_squeeze %96 : memref<1x128xf32, #tpu.memory_space<any>> -> memref<128xf32, #tpu.memory_space<any>>
      %c0_i32_57 = arith.constant 0 : i32
      %98 = tpu.memref_slice %arg8[%92, %c0_i32_55, %c0_i32_57] : memref<2x8x128xf32, #tpu.memory_space<vmem>> -> memref<1x1x128xf32, #tpu.memory_space<vmem>>
      %99 = tpu.memref_squeeze %98 : memref<1x1x128xf32, #tpu.memory_space<vmem>> -> memref<128xf32, #tpu.memory_space<vmem>>
      %100 = tpu.memref_slice %arg9[%92] : memref<2x!tpu.dma_semaphore, #tpu.memory_space<semaphore_mem>> -> memref<1x!tpu.dma_semaphore, #tpu.memory_space<semaphore_mem>>
      %101 = tpu.memref_squeeze %100 : memref<1x!tpu.dma_semaphore, #tpu.memory_space<semaphore_mem>> -> memref<!tpu.dma_semaphore, #tpu.memory_space<semaphore_mem>>
      tpu.enqueue_dma source(%97 : memref<128xf32, #tpu.memory_space<any>>) target(%99 : memref<128xf32, #tpu.memory_space<vmem>>) target_semaphore(%101 : memref<!tpu.dma_semaphore, #tpu.memory_space<semaphore_mem>>)
      %c1_i32_58 = arith.constant 1 : i32
      %102 = arith.addi %91, %c1_i32_58 : i32
      %103 = arith.index_cast %102 : i32 to index
      %104 = memref.load %arg2[%103] : memref<16xi32, #tpu.memory_space<smem>>
      %c0_i32_59 = arith.constant 0 : i32
      %105 = tpu.memref_slice %arg3[%104, %c0_i32_59] : memref<64x128xf32, #tpu.memory_space<any>> -> memref<1x128xf32, #tpu.memory_space<any>>
      %106 = tpu.memref_squeeze %105 : memref<1x128xf32, #tpu.memory_space<any>> -> memref<128xf32, #tpu.memory_space<any>>
      %c0_i32_60 = arith.constant 0 : i32
      %107 = tpu.memref_slice %arg8[%92, %c1_i32_58, %c0_i32_60] : memref<2x8x128xf32, #tpu.memory_space<vmem>> -> memref<1x1x128xf32, #tpu.memory_space<vmem>>
      %108 = tpu.memref_squeeze %107 : memref<1x1x128xf32, #tpu.memory_space<vmem>> -> memref<128xf32, #tpu.memory_space<vmem>>
      %109 = tpu.memref_slice %arg9[%92] : memref<2x!tpu.dma_semaphore, #tpu.memory_space<semaphore_mem>> -> memref<1x!tpu.dma_semaphore, #tpu.memory_space<semaphore_mem>>
      %110 = tpu.memref_squeeze %109 : memref<1x!tpu.dma_semaphore, #tpu.memory_space<semaphore_mem>> -> memref<!tpu.dma_semaphore, #tpu.memory_space<semaphore_mem>>
      tpu.enqueue_dma source(%106 : memref<128xf32, #tpu.memory_space<any>>) target(%108 : memref<128xf32, #tpu.memory_space<vmem>>) target_semaphore(%110 : memref<!tpu.dma_semaphore, #tpu.memory_space<semaphore_mem>>)
      %c2_i32_61 = arith.constant 2 : i32
      %111 = arith.addi %91, %c2_i32_61 : i32
      %112 = arith.index_cast %111 : i32 to index
      %113 = memref.load %arg2[%112] : memref<16xi32, #tpu.memory_space<smem>>
      %c0_i32_62 = arith.constant 0 : i32
      %114 = tpu.memref_slice %arg3[%113, %c0_i32_62] : memref<64x128xf32, #tpu.memory_space<any>> -> memref<1x128xf32, #tpu.memory_space<any>>
      %115 = tpu.memref_squeeze %114 : memref<1x128xf32, #tpu.memory_space<any>> -> memref<128xf32, #tpu.memory_space<any>>
      %c0_i32_63 = arith.constant 0 : i32
      %116 = tpu.memref_slice %arg8[%92, %c2_i32_61, %c0_i32_63] : memref<2x8x128xf32, #tpu.memory_space<vmem>> -> memref<1x1x128xf32, #tpu.memory_space<vmem>>
      %117 = tpu.memref_squeeze %116 : memref<1x1x128xf32, #tpu.memory_space<vmem>> -> memref<128xf32, #tpu.memory_space<vmem>>
      %118 = tpu.memref_slice %arg9[%92] : memref<2x!tpu.dma_semaphore, #tpu.memory_space<semaphore_mem>> -> memref<1x!tpu.dma_semaphore, #tpu.memory_space<semaphore_mem>>
      %119 = tpu.memref_squeeze %118 : memref<1x!tpu.dma_semaphore, #tpu.memory_space<semaphore_mem>> -> memref<!tpu.dma_semaphore, #tpu.memory_space<semaphore_mem>>
      tpu.enqueue_dma source(%115 : memref<128xf32, #tpu.memory_space<any>>) target(%117 : memref<128xf32, #tpu.memory_space<vmem>>) target_semaphore(%119 : memref<!tpu.dma_semaphore, #tpu.memory_space<semaphore_mem>>)
      %c3_i32_64 = arith.constant 3 : i32
      %120 = arith.addi %91, %c3_i32_64 : i32
      %121 = arith.index_cast %120 : i32 to index
      %122 = memref.load %arg2[%121] : memref<16xi32, #tpu.memory_space<smem>>
      %c0_i32_65 = arith.constant 0 : i32
      %123 = tpu.memref_slice %arg3[%122, %c0_i32_65] : memref<64x128xf32, #tpu.memory_space<any>> -> memref<1x128xf32, #tpu.memory_space<any>>
      %124 = tpu.memref_squeeze %123 : memref<1x128xf32, #tpu.memory_space<any>> -> memref<128xf32, #tpu.memory_space<any>>
      %c0_i32_66 = arith.constant 0 : i32
      %125 = tpu.memref_slice %arg8[%92, %c3_i32_64, %c0_i32_66] : memref<2x8x128xf32, #tpu.memory_space<vmem>> -> memref<1x1x128xf32, #tpu.memory_space<vmem>>
      %126 = tpu.memref_squeeze %125 : memref<1x1x128xf32, #tpu.memory_space<vmem>> -> memref<128xf32, #tpu.memory_space<vmem>>
      %127 = tpu.memref_slice %arg9[%92] : memref<2x!tpu.dma_semaphore, #tpu.memory_space<semaphore_mem>> -> memref<1x!tpu.dma_semaphore, #tpu.memory_space<semaphore_mem>>
      %128 = tpu.memref_squeeze %127 : memref<1x!tpu.dma_semaphore, #tpu.memory_space<semaphore_mem>> -> memref<!tpu.dma_semaphore, #tpu.memory_space<semaphore_mem>>
      tpu.enqueue_dma source(%124 : memref<128xf32, #tpu.memory_space<any>>) target(%126 : memref<128xf32, #tpu.memory_space<vmem>>) target_semaphore(%128 : memref<!tpu.dma_semaphore, #tpu.memory_space<semaphore_mem>>)
      %c4_i32_67 = arith.constant 4 : i32
      %129 = arith.addi %91, %c4_i32_67 : i32
      %130 = arith.index_cast %129 : i32 to index
      %131 = memref.load %arg2[%130] : memref<16xi32, #tpu.memory_space<smem>>
      %c0_i32_68 = arith.constant 0 : i32
      %132 = tpu.memref_slice %arg3[%131, %c0_i32_68] : memref<64x128xf32, #tpu.memory_space<any>> -> memref<1x128xf32, #tpu.memory_space<any>>
      %133 = tpu.memref_squeeze %132 : memref<1x128xf32, #tpu.memory_space<any>> -> memref<128xf32, #tpu.memory_space<any>>
      %c0_i32_69 = arith.constant 0 : i32
      %134 = tpu.memref_slice %arg8[%92, %c4_i32_67, %c0_i32_69] : memref<2x8x128xf32, #tpu.memory_space<vmem>> -> memref<1x1x128xf32, #tpu.memory_space<vmem>>
      %135 = tpu.memref_squeeze %134 : memref<1x1x128xf32, #tpu.memory_space<vmem>> -> memref<128xf32, #tpu.memory_space<vmem>>
      %136 = tpu.memref_slice %arg9[%92] : memref<2x!tpu.dma_semaphore, #tpu.memory_space<semaphore_mem>> -> memref<1x!tpu.dma_semaphore, #tpu.memory_space<semaphore_mem>>
      %137 = tpu.memref_squeeze %136 : memref<1x!tpu.dma_semaphore, #tpu.memory_space<semaphore_mem>> -> memref<!tpu.dma_semaphore, #tpu.memory_space<semaphore_mem>>
      tpu.enqueue_dma source(%133 : memref<128xf32, #tpu.memory_space<any>>) target(%135 : memref<128xf32, #tpu.memory_space<vmem>>) target_semaphore(%137 : memref<!tpu.dma_semaphore, #tpu.memory_space<semaphore_mem>>)
      %c5_i32_70 = arith.constant 5 : i32
      %138 = arith.addi %91, %c5_i32_70 : i32
      %139 = arith.index_cast %138 : i32 to index
      %140 = memref.load %arg2[%139] : memref<16xi32, #tpu.memory_space<smem>>
      %c0_i32_71 = arith.constant 0 : i32
      %141 = tpu.memref_slice %arg3[%140, %c0_i32_71] : memref<64x128xf32, #tpu.memory_space<any>> -> memref<1x128xf32, #tpu.memory_space<any>>
      %142 = tpu.memref_squeeze %141 : memref<1x128xf32, #tpu.memory_space<any>> -> memref<128xf32, #tpu.memory_space<any>>
      %c0_i32_72 = arith.constant 0 : i32
      %143 = tpu.memref_slice %arg8[%92, %c5_i32_70, %c0_i32_72] : memref<2x8x128xf32, #tpu.memory_space<vmem>> -> memref<1x1x128xf32, #tpu.memory_space<vmem>>
      %144 = tpu.memref_squeeze %143 : memref<1x1x128xf32, #tpu.memory_space<vmem>> -> memref<128xf32, #tpu.memory_space<vmem>>
      %145 = tpu.memref_slice %arg9[%92] : memref<2x!tpu.dma_semaphore, #tpu.memory_space<semaphore_mem>> -> memref<1x!tpu.dma_semaphore, #tpu.memory_space<semaphore_mem>>
      %146 = tpu.memref_squeeze %145 : memref<1x!tpu.dma_semaphore, #tpu.memory_space<semaphore_mem>> -> memref<!tpu.dma_semaphore, #tpu.memory_space<semaphore_mem>>
      tpu.enqueue_dma source(%142 : memref<128xf32, #tpu.memory_space<any>>) target(%144 : memref<128xf32, #tpu.memory_space<vmem>>) target_semaphore(%146 : memref<!tpu.dma_semaphore, #tpu.memory_space<semaphore_mem>>)
      %c6_i32_73 = arith.constant 6 : i32
      %147 = arith.addi %91, %c6_i32_73 : i32
      %148 = arith.index_cast %147 : i32 to index
      %149 = memref.load %arg2[%148] : memref<16xi32, #tpu.memory_space<smem>>
      %c0_i32_74 = arith.constant 0 : i32
      %150 = tpu.memref_slice %arg3[%149, %c0_i32_74] : memref<64x128xf32, #tpu.memory_space<any>> -> memref<1x128xf32, #tpu.memory_space<any>>
      %151 = tpu.memref_squeeze %150 : memref<1x128xf32, #tpu.memory_space<any>> -> memref<128xf32, #tpu.memory_space<any>>
      %c0_i32_75 = arith.constant 0 : i32
      %152 = tpu.memref_slice %arg8[%92, %c6_i32_73, %c0_i32_75] : memref<2x8x128xf32, #tpu.memory_space<vmem>> -> memref<1x1x128xf32, #tpu.memory_space<vmem>>
      %153 = tpu.memref_squeeze %152 : memref<1x1x128xf32, #tpu.memory_space<vmem>> -> memref<128xf32, #tpu.memory_space<vmem>>
      %154 = tpu.memref_slice %arg9[%92] : memref<2x!tpu.dma_semaphore, #tpu.memory_space<semaphore_mem>> -> memref<1x!tpu.dma_semaphore, #tpu.memory_space<semaphore_mem>>
      %155 = tpu.memref_squeeze %154 : memref<1x!tpu.dma_semaphore, #tpu.memory_space<semaphore_mem>> -> memref<!tpu.dma_semaphore, #tpu.memory_space<semaphore_mem>>
      tpu.enqueue_dma source(%151 : memref<128xf32, #tpu.memory_space<any>>) target(%153 : memref<128xf32, #tpu.memory_space<vmem>>) target_semaphore(%155 : memref<!tpu.dma_semaphore, #tpu.memory_space<semaphore_mem>>)
      %c7_i32_76 = arith.constant 7 : i32
      %156 = arith.addi %91, %c7_i32_76 : i32
      %157 = arith.index_cast %156 : i32 to index
      %158 = memref.load %arg2[%157] : memref<16xi32, #tpu.memory_space<smem>>
      %c0_i32_77 = arith.constant 0 : i32
      %159 = tpu.memref_slice %arg3[%158, %c0_i32_77] : memref<64x128xf32, #tpu.memory_space<any>> -> memref<1x128xf32, #tpu.memory_space<any>>
      %160 = tpu.memref_squeeze %159 : memref<1x128xf32, #tpu.memory_space<any>> -> memref<128xf32, #tpu.memory_space<any>>
      %c0_i32_78 = arith.constant 0 : i32
      %161 = tpu.memref_slice %arg8[%92, %c7_i32_76, %c0_i32_78] : memref<2x8x128xf32, #tpu.memory_space<vmem>> -> memref<1x1x128xf32, #tpu.memory_space<vmem>>
      %162 = tpu.memref_squeeze %161 : memref<1x1x128xf32, #tpu.memory_space<vmem>> -> memref<128xf32, #tpu.memory_space<vmem>>
      %163 = tpu.memref_slice %arg9[%92] : memref<2x!tpu.dma_semaphore, #tpu.memory_space<semaphore_mem>> -> memref<1x!tpu.dma_semaphore, #tpu.memory_space<semaphore_mem>>
      %164 = tpu.memref_squeeze %163 : memref<1x!tpu.dma_semaphore, #tpu.memory_space<semaphore_mem>> -> memref<!tpu.dma_semaphore, #tpu.memory_space<semaphore_mem>>
      tpu.enqueue_dma source(%160 : memref<128xf32, #tpu.memory_space<any>>) target(%162 : memref<128xf32, #tpu.memory_space<vmem>>) target_semaphore(%164 : memref<!tpu.dma_semaphore, #tpu.memory_space<semaphore_mem>>)
      %c8_i32_79 = arith.constant 8 : i32
    } else {
    }
    %c0_i32_3 = arith.constant 0 : i32
    %c0_i32_4 = arith.constant 0 : i32
    %c0_i32_5 = arith.constant 0 : i32
    %c0_i32_6 = arith.constant 0 : i32
    %8 = tpu.memref_slice %arg3[%c0_i32_4, %c0_i32_6] : memref<64x128xf32, #tpu.memory_space<any>> -> memref<1x128xf32, #tpu.memory_space<any>>
    %9 = tpu.memref_squeeze %8 : memref<1x128xf32, #tpu.memory_space<any>> -> memref<128xf32, #tpu.memory_space<any>>
    %c0_i32_7 = arith.constant 0 : i32
    %10 = tpu.memref_slice %arg8[%0, %c0_i32_5, %c0_i32_7] : memref<2x8x128xf32, #tpu.memory_space<vmem>> -> memref<1x1x128xf32, #tpu.memory_space<vmem>>
    %11 = tpu.memref_squeeze %10 : memref<1x1x128xf32, #tpu.memory_space<vmem>> -> memref<128xf32, #tpu.memory_space<vmem>>
    %12 = tpu.memref_slice %arg9[%0] : memref<2x!tpu.dma_semaphore, #tpu.memory_space<semaphore_mem>> -> memref<1x!tpu.dma_semaphore, #tpu.memory_space<semaphore_mem>>
    %13 = tpu.memref_squeeze %12 : memref<1x!tpu.dma_semaphore, #tpu.memory_space<semaphore_mem>> -> memref<!tpu.dma_semaphore, #tpu.memory_space<semaphore_mem>>
    tpu.wait_dma2 semaphore(%13 : memref<!tpu.dma_semaphore, #tpu.memory_space<semaphore_mem>>) src(%9 : memref<128xf32, #tpu.memory_space<any>>) dst(%11 : memref<128xf32, #tpu.memory_space<vmem>>)
    %c1_i32_8 = arith.constant 1 : i32
    %c0_i32_9 = arith.constant 0 : i32
    %c0_i32_10 = arith.constant 0 : i32
    %c0_i32_11 = arith.constant 0 : i32
    %14 = tpu.memref_slice %arg3[%c0_i32_9, %c0_i32_11] : memref<64x128xf32, #tpu.memory_space<any>> -> memref<1x128xf32, #tpu.memory_space<any>>
    %15 = tpu.memref_squeeze %14 : memref<1x128xf32, #tpu.memory_space<any>> -> memref<128xf32, #tpu.memory_space<any>>
    %c0_i32_12 = arith.constant 0 : i32
    %16 = tpu.memref_slice %arg8[%0, %c0_i32_10, %c0_i32_12] : memref<2x8x128xf32, #tpu.memory_space<vmem>> -> memref<1x1x128xf32, #tpu.memory_space<vmem>>
    %17 = tpu.memref_squeeze %16 : memref<1x1x128xf32, #tpu.memory_space<vmem>> -> memref<128xf32, #tpu.memory_space<vmem>>
    %18 = tpu.memref_slice %arg9[%0] : memref<2x!tpu.dma_semaphore, #tpu.memory_space<semaphore_mem>> -> memref<1x!tpu.dma_semaphore, #tpu.memory_space<semaphore_mem>>
    %19 = tpu.memref_squeeze %18 : memref<1x!tpu.dma_semaphore, #tpu.memory_space<semaphore_mem>> -> memref<!tpu.dma_semaphore, #tpu.memory_space<semaphore_mem>>
    tpu.wait_dma2 semaphore(%19 : memref<!tpu.dma_semaphore, #tpu.memory_space<semaphore_mem>>) src(%15 : memref<128xf32, #tpu.memory_space<any>>) dst(%17 : memref<128xf32, #tpu.memory_space<vmem>>)
    %c2_i32_13 = arith.constant 2 : i32
    %c0_i32_14 = arith.constant 0 : i32
    %c0_i32_15 = arith.constant 0 : i32
    %c0_i32_16 = arith.constant 0 : i32
    %20 = tpu.memref_slice %arg3[%c0_i32_14, %c0_i32_16] : memref<64x128xf32, #tpu.memory_space<any>> -> memref<1x128xf32, #tpu.memory_space<any>>
    %21 = tpu.memref_squeeze %20 : memref<1x128xf32, #tpu.memory_space<any>> -> memref<128xf32, #tpu.memory_space<any>>
    %c0_i32_17 = arith.constant 0 : i32
    %22 = tpu.memref_slice %arg8[%0, %c0_i32_15, %c0_i32_17] : memref<2x8x128xf32, #tpu.memory_space<vmem>> -> memref<1x1x128xf32, #tpu.memory_space<vmem>>
    %23 = tpu.memref_squeeze %22 : memref<1x1x128xf32, #tpu.memory_space<vmem>> -> memref<128xf32, #tpu.memory_space<vmem>>
    %24 = tpu.memref_slice %arg9[%0] : memref<2x!tpu.dma_semaphore, #tpu.memory_space<semaphore_mem>> -> memref<1x!tpu.dma_semaphore, #tpu.memory_space<semaphore_mem>>
    %25 = tpu.memref_squeeze %24 : memref<1x!tpu.dma_semaphore, #tpu.memory_space<semaphore_mem>> -> memref<!tpu.dma_semaphore, #tpu.memory_space<semaphore_mem>>
    tpu.wait_dma2 semaphore(%25 : memref<!tpu.dma_semaphore, #tpu.memory_space<semaphore_mem>>) src(%21 : memref<128xf32, #tpu.memory_space<any>>) dst(%23 : memref<128xf32, #tpu.memory_space<vmem>>)
    %c3_i32 = arith.constant 3 : i32
    %c0_i32_18 = arith.constant 0 : i32
    %c0_i32_19 = arith.constant 0 : i32
    %c0_i32_20 = arith.constant 0 : i32
    %26 = tpu.memref_slice %arg3[%c0_i32_18, %c0_i32_20] : memref<64x128xf32, #tpu.memory_space<any>> -> memref<1x128xf32, #tpu.memory_space<any>>
    %27 = tpu.memref_squeeze %26 : memref<1x128xf32, #tpu.memory_space<any>> -> memref<128xf32, #tpu.memory_space<any>>
    %c0_i32_21 = arith.constant 0 : i32
    %28 = tpu.memref_slice %arg8[%0, %c0_i32_19, %c0_i32_21] : memref<2x8x128xf32, #tpu.memory_space<vmem>> -> memref<1x1x128xf32, #tpu.memory_space<vmem>>
    %29 = tpu.memref_squeeze %28 : memref<1x1x128xf32, #tpu.memory_space<vmem>> -> memref<128xf32, #tpu.memory_space<vmem>>
    %30 = tpu.memref_slice %arg9[%0] : memref<2x!tpu.dma_semaphore, #tpu.memory_space<semaphore_mem>> -> memref<1x!tpu.dma_semaphore, #tpu.memory_space<semaphore_mem>>
    %31 = tpu.memref_squeeze %30 : memref<1x!tpu.dma_semaphore, #tpu.memory_space<semaphore_mem>> -> memref<!tpu.dma_semaphore, #tpu.memory_space<semaphore_mem>>
    tpu.wait_dma2 semaphore(%31 : memref<!tpu.dma_semaphore, #tpu.memory_space<semaphore_mem>>) src(%27 : memref<128xf32, #tpu.memory_space<any>>) dst(%29 : memref<128xf32, #tpu.memory_space<vmem>>)
    %c4_i32 = arith.constant 4 : i32
    %c0_i32_22 = arith.constant 0 : i32
    %c0_i32_23 = arith.constant 0 : i32
    %c0_i32_24 = arith.constant 0 : i32
    %32 = tpu.memref_slice %arg3[%c0_i32_22, %c0_i32_24] : memref<64x128xf32, #tpu.memory_space<any>> -> memref<1x128xf32, #tpu.memory_space<any>>
    %33 = tpu.memref_squeeze %32 : memref<1x128xf32, #tpu.memory_space<any>> -> memref<128xf32, #tpu.memory_space<any>>
    %c0_i32_25 = arith.constant 0 : i32
    %34 = tpu.memref_slice %arg8[%0, %c0_i32_23, %c0_i32_25] : memref<2x8x128xf32, #tpu.memory_space<vmem>> -> memref<1x1x128xf32, #tpu.memory_space<vmem>>
    %35 = tpu.memref_squeeze %34 : memref<1x1x128xf32, #tpu.memory_space<vmem>> -> memref<128xf32, #tpu.memory_space<vmem>>
    %36 = tpu.memref_slice %arg9[%0] : memref<2x!tpu.dma_semaphore, #tpu.memory_space<semaphore_mem>> -> memref<1x!tpu.dma_semaphore, #tpu.memory_space<semaphore_mem>>
    %37 = tpu.memref_squeeze %36 : memref<1x!tpu.dma_semaphore, #tpu.memory_space<semaphore_mem>> -> memref<!tpu.dma_semaphore, #tpu.memory_space<semaphore_mem>>
    tpu.wait_dma2 semaphore(%37 : memref<!tpu.dma_semaphore, #tpu.memory_space<semaphore_mem>>) src(%33 : memref<128xf32, #tpu.memory_space<any>>) dst(%35 : memref<128xf32, #tpu.memory_space<vmem>>)
    %c5_i32 = arith.constant 5 : i32
    %c0_i32_26 = arith.constant 0 : i32
    %c0_i32_27 = arith.constant 0 : i32
    %c0_i32_28 = arith.constant 0 : i32
    %38 = tpu.memref_slice %arg3[%c0_i32_26, %c0_i32_28] : memref<64x128xf32, #tpu.memory_space<any>> -> memref<1x128xf32, #tpu.memory_space<any>>
    %39 = tpu.memref_squeeze %38 : memref<1x128xf32, #tpu.memory_space<any>> -> memref<128xf32, #tpu.memory_space<any>>
    %c0_i32_29 = arith.constant 0 : i32
    %40 = tpu.memref_slice %arg8[%0, %c0_i32_27, %c0_i32_29] : memref<2x8x128xf32, #tpu.memory_space<vmem>> -> memref<1x1x128xf32, #tpu.memory_space<vmem>>
    %41 = tpu.memref_squeeze %40 : memref<1x1x128xf32, #tpu.memory_space<vmem>> -> memref<128xf32, #tpu.memory_space<vmem>>
    %42 = tpu.memref_slice %arg9[%0] : memref<2x!tpu.dma_semaphore, #tpu.memory_space<semaphore_mem>> -> memref<1x!tpu.dma_semaphore, #tpu.memory_space<semaphore_mem>>
    %43 = tpu.memref_squeeze %42 : memref<1x!tpu.dma_semaphore, #tpu.memory_space<semaphore_mem>> -> memref<!tpu.dma_semaphore, #tpu.memory_space<semaphore_mem>>
    tpu.wait_dma2 semaphore(%43 : memref<!tpu.dma_semaphore, #tpu.memory_space<semaphore_mem>>) src(%39 : memref<128xf32, #tpu.memory_space<any>>) dst(%41 : memref<128xf32, #tpu.memory_space<vmem>>)
    %c6_i32 = arith.constant 6 : i32
    %c0_i32_30 = arith.constant 0 : i32
    %c0_i32_31 = arith.constant 0 : i32
    %c0_i32_32 = arith.constant 0 : i32
    %44 = tpu.memref_slice %arg3[%c0_i32_30, %c0_i32_32] : memref<64x128xf32, #tpu.memory_space<any>> -> memref<1x128xf32, #tpu.memory_space<any>>
    %45 = tpu.memref_squeeze %44 : memref<1x128xf32, #tpu.memory_space<any>> -> memref<128xf32, #tpu.memory_space<any>>
    %c0_i32_33 = arith.constant 0 : i32
    %46 = tpu.memref_slice %arg8[%0, %c0_i32_31, %c0_i32_33] : memref<2x8x128xf32, #tpu.memory_space<vmem>> -> memref<1x1x128xf32, #tpu.memory_space<vmem>>
    %47 = tpu.memref_squeeze %46 : memref<1x1x128xf32, #tpu.memory_space<vmem>> -> memref<128xf32, #tpu.memory_space<vmem>>
    %48 = tpu.memref_slice %arg9[%0] : memref<2x!tpu.dma_semaphore, #tpu.memory_space<semaphore_mem>> -> memref<1x!tpu.dma_semaphore, #tpu.memory_space<semaphore_mem>>
    %49 = tpu.memref_squeeze %48 : memref<1x!tpu.dma_semaphore, #tpu.memory_space<semaphore_mem>> -> memref<!tpu.dma_semaphore, #tpu.memory_space<semaphore_mem>>
    tpu.wait_dma2 semaphore(%49 : memref<!tpu.dma_semaphore, #tpu.memory_space<semaphore_mem>>) src(%45 : memref<128xf32, #tpu.memory_space<any>>) dst(%47 : memref<128xf32, #tpu.memory_space<vmem>>)
    %c7_i32 = arith.constant 7 : i32
    %c0_i32_34 = arith.constant 0 : i32
    %c0_i32_35 = arith.constant 0 : i32
    %c0_i32_36 = arith.constant 0 : i32
    %50 = tpu.memref_slice %arg3[%c0_i32_34, %c0_i32_36] : memref<64x128xf32, #tpu.memory_space<any>> -> memref<1x128xf32, #tpu.memory_space<any>>
    %51 = tpu.memref_squeeze %50 : memref<1x128xf32, #tpu.memory_space<any>> -> memref<128xf32, #tpu.memory_space<any>>
    %c0_i32_37 = arith.constant 0 : i32
    %52 = tpu.memref_slice %arg8[%0, %c0_i32_35, %c0_i32_37] : memref<2x8x128xf32, #tpu.memory_space<vmem>> -> memref<1x1x128xf32, #tpu.memory_space<vmem>>
    %53 = tpu.memref_squeeze %52 : memref<1x1x128xf32, #tpu.memory_space<vmem>> -> memref<128xf32, #tpu.memory_space<vmem>>
    %54 = tpu.memref_slice %arg9[%0] : memref<2x!tpu.dma_semaphore, #tpu.memory_space<semaphore_mem>> -> memref<1x!tpu.dma_semaphore, #tpu.memory_space<semaphore_mem>>
    %55 = tpu.memref_squeeze %54 : memref<1x!tpu.dma_semaphore, #tpu.memory_space<semaphore_mem>> -> memref<!tpu.dma_semaphore, #tpu.memory_space<semaphore_mem>>
    tpu.wait_dma2 semaphore(%55 : memref<!tpu.dma_semaphore, #tpu.memory_space<semaphore_mem>>) src(%51 : memref<128xf32, #tpu.memory_space<any>>) dst(%53 : memref<128xf32, #tpu.memory_space<vmem>>)
    %56 = arith.index_cast %0 : i32 to index
    %c0 = arith.constant 0 : index
    %c0_38 = arith.constant 0 : index
    %57 = vector.load %arg8[%56, %c0, %c0_38] : memref<2x8x128xf32, #tpu.memory_space<vmem>>, vector<1x8x128xf32>
    %58 = vector.shape_cast %57 : vector<1x8x128xf32> to vector<8x128xf32>
    %c0_39 = arith.constant 0 : index
    %c0_40 = arith.constant 0 : index
    %59 = vector.load %arg4[%c0_39, %c0_40] : memref<8x128xf32, #tpu.memory_space<vmem>>, vector<8x128xf32>
    %60 = arith.addf %58, %59 : vector<8x128xf32>
    %cst = arith.constant dense<0.000000e+00> : vector<8xf32>
    %61 = vector.multi_reduction <add>, %60, %cst [1] : vector<8x128xf32> to vector<8xf32>
    %62 = vector.shape_cast %61 : vector<8xf32> to vector<8x1xf32>
    %63 = arith.mulf %60, %60 : vector<8x128xf32>
    %cst_41 = arith.constant dense<0.000000e+00> : vector<8xf32>
    %64 = vector.multi_reduction <add>, %63, %cst_41 [1] : vector<8x128xf32> to vector<8xf32>
    %65 = vector.shape_cast %64 : vector<8xf32> to vector<8x1xf32>
    %cst_42 = arith.constant 7.812500e-03 : f32
    %66 = vector.broadcast %cst_42 : f32 to vector<8x1xf32>
    %67 = arith.mulf %62, %66 : vector<8x1xf32>
    %cst_43 = arith.constant 7.812500e-03 : f32
    %68 = vector.broadcast %cst_43 : f32 to vector<8x1xf32>
    %69 = arith.mulf %65, %68 : vector<8x1xf32>
    %70 = arith.mulf %67, %67 : vector<8x1xf32>
    %71 = arith.subf %69, %70 : vector<8x1xf32>
    %cst_44 = arith.constant 0.000000e+00 : f32
    %72 = vector.broadcast %cst_44 : f32 to vector<8x1xf32>
    %73 = arith.maximumf %71, %72 : vector<8x1xf32>
    %cst_45 = arith.constant 9.99999996E-13 : f32
    %74 = vector.broadcast %cst_45 : f32 to vector<8x1xf32>
    %75 = arith.addf %73, %74 : vector<8x1xf32>
    %76 = math.rsqrt %75 : vector<8x1xf32>
    %77 = vector.broadcast %67 : vector<8x1xf32> to vector<8x128xf32>
    %78 = arith.subf %60, %77 : vector<8x128xf32>
    %79 = vector.broadcast %76 : vector<8x1xf32> to vector<8x128xf32>
    %80 = arith.mulf %78, %79 : vector<8x128xf32>
    %c0_46 = arith.constant 0 : index
    %c0_47 = arith.constant 0 : index
    %81 = vector.load %arg5[%c0_46, %c0_47] : memref<1x128xf32, #tpu.memory_space<vmem>>, vector<1x128xf32>
    %82 = vector.broadcast %81 : vector<1x128xf32> to vector<8x128xf32>
    %83 = arith.mulf %80, %82 : vector<8x128xf32>
    %c0_48 = arith.constant 0 : index
    %c0_49 = arith.constant 0 : index
    %84 = vector.load %arg6[%c0_48, %c0_49] : memref<1x128xf32, #tpu.memory_space<vmem>>, vector<1x128xf32>
    %85 = vector.broadcast %84 : vector<1x128xf32> to vector<8x128xf32>
    %86 = arith.addf %83, %85 : vector<8x128xf32>
    %c0_50 = arith.constant 0 : index
    %c0_51 = arith.constant 0 : index
    %87 = vector.load %arg7[%c0_50, %c0_51] : memref<8x128xf32, #tpu.memory_space<vmem>>, vector<8x128xf32>
    tpu.vector_store %arg7[%c0_50, %c0_51], %86 {strides = array<i32>} : memref<8x128xf32, #tpu.memory_space<vmem>>, vector<8x128xf32>,
    return
  }
  func.func @transform_1(%arg0: i32, %arg1: i32, %arg2: memref<16xi32, #tpu.memory_space<smem>>) -> (i32, i32) {
    %c0_i32 = arith.constant 0 : i32
    %c0_i32_0 = arith.constant 0 : i32
    return %arg0, %c0_i32 : i32, i32
  }
  func.func @transform_2(%arg0: i32, %arg1: i32, %arg2: memref<16xi32, #tpu.memory_space<smem>>) -> (i32, i32) {
    %c0_i32 = arith.constant 0 : i32
    %c0_i32_0 = arith.constant 0 : i32
    %c0_i32_1 = arith.constant 0 : i32
    return %c0_i32, %c0_i32_0 : i32, i32
  }
  func.func @transform_3(%arg0: i32, %arg1: i32, %arg2: memref<16xi32, #tpu.memory_space<smem>>) -> (i32, i32) {
    %c0_i32 = arith.constant 0 : i32
    %c0_i32_0 = arith.constant 0 : i32
    %c0_i32_1 = arith.constant 0 : i32
    return %c0_i32, %c0_i32_0 : i32, i32
  }
  func.func @transform_4(%arg0: i32, %arg1: i32, %arg2: memref<16xi32, #tpu.memory_space<smem>>) -> (i32, i32) {
    %c1_i32 = arith.constant 1 : i32
    %0 = arith.muli %arg1, %c1_i32 : i32
    %1 = arith.addi %0, %arg0 : i32
    %c0_i32 = arith.constant 0 : i32
    %c0_i32_0 = arith.constant 0 : i32
    return %1, %c0_i32 : i32, i32
  }
}

</mosaic_0001>

<llo_original>
// kernel: tpu_custom_call.1
$region0: #{tpu_custom_call.1}
  #allocation0 [shape = 'u32[]', space=smem, size = 0x4, offset = 0x4, fixed_abs, tag = 'smem constant byte address 0x4 - core index']
  #allocation1 [shape = 'u32[144,128]{1,0:T(1,128)}', space=vmem, size = 0x12000, scoped, tag = 'internal scratch']
  #allocation2 [shape = 'f32[2,8,128]{2,1,0:T(8,128)}', space=vmem, size = 0x2000, scoped, tag = 'scratch operand']
  #allocation3 [shape = 's32[2]{0}', space=sflag, size = 0x8, scoped, tag = 'scratch operand']
  #allocation4 [shape = 's32[1]{0}', space=sflag, size = 0x4, scoped, tag = 'scoped memory for tpu_custom_call.1']
  #allocation5 [shape = 'u8[512]{0}', space=smem, size = 0x200, scoped, tag = 'prefetched SMEM operand 0']
  #allocation10 [shape = 's32[]', space=sflag, size = 0x4, offset = 0, fixed_abs, tag = 'sflag constant byte address 0x0 - dummy sync flag']
  #allocation11 [shape = 's32[]', space=sflag, size = 0x4, offset = 0, fixed_abs, tag = 'sflag constant byte address 0x0 - dummy sync flag']
  #allocation12 [shape = 'u32[]', space=smem, size = 0x4, offset = 0x44, fixed_abs, tag = 'smem constant byte address 0x44 - assertion arg 0']
  #allocation13 [shape = 'u32[]', space=smem, size = 0x4, offset = 0x48, fixed_abs, tag = 'smem constant byte address 0x48 - assertion arg 1']
  #allocation14 [shape = 's32[]', space=sflag, size = 0x4, offset = 0, fixed_abs, tag = 'sflag constant byte address 0x0 - dummy sync flag']
  #allocation15 [shape = 's32[]', space=sflag, size = 0x4, offset = 0, fixed_abs, tag = 'sflag constant byte address 0x0 - dummy sync flag']
  #allocation16 [shape = 's32[]', space=sflag, size = 0x4, offset = 0, fixed_abs, tag = 'sflag constant byte address 0x0 - dummy sync flag']
  #allocation17 [shape = 's32[]', space=sflag, size = 0x4, offset = 0, fixed_abs, tag = 'sflag constant byte address 0x0 - dummy sync flag']
  #allocation18 [shape = 's32[]', space=sflag, size = 0x4, offset = 0, fixed_abs, tag = 'sflag constant byte address 0x0 - dummy sync flag']
  #allocation19 [shape = 's32[]', space=sflag, size = 0x4, offset = 0, fixed_abs, tag = 'sflag constant byte address 0x0 - dummy sync flag']
  #allocation20 [shape = 's32[]', space=sflag, size = 0x4, offset = 0, fixed_abs, tag = 'sflag constant byte address 0x0 - dummy sync flag']
  #allocation21 [shape = 's32[]', space=sflag, size = 0x4, offset = 0, fixed_abs, tag = 'sflag constant byte address 0x0 - dummy sync flag']
  #allocation22 [shape = 's32[]', space=sflag, size = 0x4, offset = 0, fixed_abs, tag = 'sflag constant byte address 0x0 - dummy sync flag']
  #allocation23 [shape = 's32[]', space=sflag, size = 0x4, offset = 0, fixed_abs, tag = 'sflag constant byte address 0x0 - dummy sync flag']
  #allocation24 [shape = 's32[]', space=sflag, size = 0x4, offset = 0, fixed_abs, tag = 'sflag constant byte address 0x0 - dummy sync flag']
  #allocation25 [shape = 's32[]', space=sflag, size = 0x4, offset = 0, fixed_abs, tag = 'sflag constant byte address 0x0 - dummy sync flag']
  #allocation26 [shape = 's32[]', space=sflag, size = 0x4, offset = 0, fixed_abs, tag = 'sflag constant byte address 0x0 - dummy sync flag']
  #allocation27 [shape = 's32[]', space=sflag, size = 0x4, offset = 0, fixed_abs, tag = 'sflag constant byte address 0x0 - dummy sync flag']
  #allocation28 [shape = 's32[]', space=sflag, size = 0x4, offset = 0, fixed_abs, tag = 'sflag constant byte address 0x0 - dummy sync flag']
  #allocation29 [shape = 's32[]', space=sflag, size = 0x4, offset = 0, fixed_abs, tag = 'sflag constant byte address 0x0 - dummy sync flag']
  #allocation30 [shape = 's32[]', space=sflag, size = 0x4, offset = 0, fixed_abs, tag = 'sflag constant byte address 0x0 - dummy sync flag']
  #allocation31 [shape = 's32[]', space=sflag, size = 0x4, offset = 0, fixed_abs, tag = 'sflag constant byte address 0x0 - dummy sync flag']
  #allocation32 [shape = 's32[]', space=sflag, size = 0x4, offset = 0, fixed_abs, tag = 'sflag constant byte address 0x0 - dummy sync flag']
  #allocation33 [shape = 's32[]', space=sflag, size = 0x4, offset = 0, fixed_abs, tag = 'sflag constant byte address 0x0 - dummy sync flag']
  #allocation34 [shape = 's32[]', space=sflag, size = 0x4, offset = 0, fixed_abs, tag = 'sflag constant byte address 0x0 - dummy sync flag']
  #allocation35 [shape = 's32[]', space=sflag, size = 0x4, offset = 0, fixed_abs, tag = 'sflag constant byte address 0x0 - dummy sync flag']
  #allocation36 [shape = 's32[]', space=sflag, size = 0x4, offset = 0, fixed_abs, tag = 'sflag constant byte address 0x0 - dummy sync flag']
  #allocation37 [shape = 's32[]', space=sflag, size = 0x4, offset = 0, fixed_abs, tag = 'sflag constant byte address 0x0 - dummy sync flag']
  #allocation38 [shape = 's32[]', space=sflag, size = 0x4, offset = 0, fixed_abs, tag = 'sflag constant byte address 0x0 - dummy sync flag']
  #allocation39 [shape = 's32[]', space=sflag, size = 0x4, offset = 0, fixed_abs, tag = 'sflag constant byte address 0x0 - dummy sync flag']
  #allocation40 [shape = 's32[]', space=sflag, size = 0x4, offset = 0, fixed_abs, tag = 'sflag constant byte address 0x0 - dummy sync flag']
  #allocation41 [shape = 's32[]', space=sflag, size = 0x4, offset = 0, fixed_abs, tag = 'sflag constant byte address 0x0 - dummy sync flag']
  #allocation42 [shape = 's32[]', space=sflag, size = 0x4, offset = 0, fixed_abs, tag = 'sflag constant byte address 0x0 - dummy sync flag']
  #allocation43 [shape = 's32[]', space=sflag, size = 0x4, offset = 0, fixed_abs, tag = 'sflag constant byte address 0x0 - dummy sync flag']
  %s0 = inlined_call_operand.hbm [shape: s32[16], index: 0, kind: input, shape index: {}]
  %s1 = inlined_call_operand.hbm [shape: f32[64,128], index: 1, kind: input, shape index: {}]
  %s2 = inlined_call_operand.hbm [shape: f32[8,128], index: 2, kind: input, shape index: {}]
  %s3 = inlined_call_operand.vmem [shape: f32[1,128], index: 3, kind: input, shape index: {}]
  %s4 = inlined_call_operand.vmem [shape: f32[1,128], index: 4, kind: input, shape index: {}]
  %s5 = inlined_call_operand.hbm [shape: f32[16,128], index: 5, kind: output, shape index: {}]
  %s6 = sld [smem:[#allocation0]]
  $region121: #{tpu_custom_call.1} parent=0
    _
  %s8 = ssub.s32 1, %s6
  %s9 = scalar_select 0, %s8, %s6
  %11 = dma.hbm_to_smem %s0, 16, [#allocation5], [#allocation4]
  %12 = dma.done [#allocation4], 16
  %13 = sfence
  $region1: #{tpu_custom_call.1} parent=0
    #allocation6 [shape = 'u8[4096]{0}', space=vmem, size = 0x1000, scoped, tag = 'input window, operand 2, single buffered']
    #allocation7 [shape = 's32[2]{0}', space=sflag, size = 0x8, scoped, tag = 'scoped memory for tpu_custom_call.1']
    #allocation8 [shape = 's32[2]{0}', space=sflag, size = 0x8, scoped, tag = 'scoped memory for tpu_custom_call.1']
    #allocation9 [shape = 'u8[8192]{0}', space=vmem, size = 0x2000, scoped, tag = 'output window, operand 0']
    %14 = vsyncpa [#allocation7], 0
    %15 = vsyncpa [#allocation8], 0
    %s16 = scalar_lea.sflag [#allocation8], 1
    %17 = vsyncpa %s16, 0
    loop: start=0, step=1, limit=4
    $region2: #{tpu_custom_call.1} parent=1 // loop_pre_header
      _
    $region3: #{tpu_custom_call.1} parent=1 // loop_header
      %s19 = sphi 0, %s23
      %p20 = scmp.ge.s32.totalorder %s19, 4
      %s26 = sphi 0, %s38
      %s27 = sphi 0, %s34
      %s28 = sphi 0, %s26
      %s29 = sphi 0, %s27
      %s30 = sphi 0, %s28
      %s31 = sphi 0, %s29
      %s41 = sphi 0, %s43
      %s44 = sphi 0, %s41
      %s45 = sphi 0, %s44
      %s61 = sphi 0, %s45
      %s65 = sphi 0, %s65
      %s67 = sphi 0, %s65
      %s68 = sphi 0, %s67
      %s82 = sphi 0, %s68
      %s86 = sphi 0, %s86
      %s88 = sphi 0, %s86
      %s89 = sphi 0, %s88
      %s103 = sphi 0, %s89
      %s111 = sphi 0, %s113
      %s114 = sphi 0, %s111
      %s115 = sphi 0, %s114
      %s131 = sphi 0, %s115
    $region4: #{tpu_custom_call.1} parent=1 // loop_header_branch
      %22 = sbr.rel (%p20) target = $region8
    $region5: #{tpu_custom_call.1} parent=1 // loop_body
      %s24 = ssub.s32 %s19, 1
      %s25 = ssub.s32 %s19, 2
      %s32 = sadd.s32 1, %s27
      %p33 = scmp.ge.s32.totalorder %s32, 2
      %s34 = scalar_select %p33, 0, %s32
      %s35 = sadd.s32 1, %s26
      %s36 = scalar_select %p33, %s35, %s26
      %p37 = scmp.ge.s32.totalorder %s36, 1
      %s38 = scalar_select %p37, 0, %s36
      %s39 = ssub.s32 %s26, %s38
      %p40 = scmp.eq.s32.totalorder %s39, 0
      %s42 = sadd.s32 %s41, 1
      %s43 = scalar_select %p40, %s41, %s42
      %p46 = pneg %p40
      %p47 = scmp.eq.s32.totalorder %s19, 1
      %p48 = por %p46, %p47
      %p49 = scmp.ne.s32.totalorder %s41, %s44
      %p50 = scmp.eq.s32.totalorder %s19, 0
      %p51 = por %p49, %p50
      %p52 = scmp.ne.s32.totalorder %s41, %s44
      %p53 = scmp.eq.s32.totalorder %s24, 1
      %p54 = por %p52, %p53
      %p55 = scmp.ne.s32.totalorder %s44, %s45
      %p56 = scmp.eq.s32.totalorder %s24, 0
      %p57 = por %p55, %p56
      %p58 = scmp.ne.s32.totalorder %s44, %s45
      %p59 = scmp.eq.s32.totalorder %s25, 1
      %p60 = por %p58, %p59
      %p62 = scmp.ne.s32.totalorder %s45, %s61
      %p63 = scmp.eq.s32.totalorder %s25, 0
      %p64 = por %p62, %p63
      %s66 = sadd.s32 %s65, 1
      %p69 = scmp.eq.s32.totalorder %s19, 1
      %p70 = scmp.ne.s32.totalorder %s65, %s67
      %p71 = scmp.eq.s32.totalorder %s19, 0
      %p72 = por %p70, %p71
      %p73 = scmp.ne.s32.totalorder %s65, %s67
      %p74 = scmp.eq.s32.totalorder %s24, 1
      %p75 = por %p73, %p74
      %p76 = scmp.ne.s32.totalorder %s67, %s68
      %p77 = scmp.eq.s32.totalorder %s24, 0
      %p78 = por %p76, %p77
      %p79 = scmp.ne.s32.totalorder %s67, %s68
      %p80 = scmp.eq.s32.totalorder %s25, 1
      %p81 = por %p79, %p80
      %p83 = scmp.ne.s32.totalorder %s68, %s82
      %p84 = scmp.eq.s32.totalorder %s25, 0
      %p85 = por %p83, %p84
      %s87 = sadd.s32 %s86, 1
      %p90 = scmp.eq.s32.totalorder %s19, 1
      %p91 = scmp.ne.s32.totalorder %s86, %s88
      %p92 = scmp.eq.s32.totalorder %s19, 0
      %p93 = por %p91, %p92
      %p94 = scmp.ne.s32.totalorder %s86, %s88
      %p95 = scmp.eq.s32.totalorder %s24, 1
      %p96 = por %p94, %p95
      %p97 = scmp.ne.s32.totalorder %s88, %s89
      %p98 = scmp.eq.s32.totalorder %s24, 0
      %p99 = por %p97, %p98
      %p100 = scmp.ne.s32.totalorder %s88, %s89
      %p101 = scmp.eq.s32.totalorder %s25, 1
      %p102 = por %p100, %p101
      %p104 = scmp.ne.s32.totalorder %s89, %s103
      %p105 = scmp.eq.s32.totalorder %s25, 0
      %p106 = por %p104, %p105
      %s107 = sadd.s32 %s27, %s26
      %s108 = sadd.s32 %s34, %s38
      %s109 = ssub.s32 %s107, %s108
      %p110 = scmp.eq.s32.totalorder %s109, 0
      %s112 = sadd.s32 %s111, 1
      %s113 = scalar_select %p110, %s111, %s112
      %p116 = pneg %p110
      %p117 = scmp.eq.s32.totalorder %s19, 1
      %p118 = por %p116, %p117
      %p119 = scmp.ne.s32.totalorder %s111, %s114
      %p120 = scmp.eq.s32.totalorder %s19, 0
      %p121 = por %p119, %p120
      %p122 = scmp.ne.s32.totalorder %s111, %s114
      %p123 = scmp.eq.s32.totalorder %s24, 1
      %p124 = por %p122, %p123
      %p125 = scmp.ne.s32.totalorder %s114, %s115
      %p126 = scmp.eq.s32.totalorder %s24, 0
      %p127 = por %p125, %p126
      %p128 = scmp.ne.s32.totalorder %s114, %s115
      %p129 = scmp.eq.s32.totalorder %s25, 1
      %p130 = por %p128, %p129
      %p132 = scmp.ne.s32.totalorder %s115, %s131
      %p133 = scmp.eq.s32.totalorder %s25, 0
      %p134 = por %p132, %p133
      %p135 = scmp.le.s32.totalorder 1, %s19
      %p136 = scmp.lt.s32.totalorder %s19, 3
      %p137 = pnand %p135, %p136
      %p138 = pneg %p137
      // Predicated region
      $region9: #{tpu_custom_call.1} parent=5 // pred_check
        _
      $region10: #{tpu_custom_call.1} parent=5 // pred_check_branch
        %140 = sbr.rel (%p137) target = $region12
      $region11: #{tpu_custom_call.1} parent=5 // pred_region
        %s141 = ssub.s32 %s19, 1
        // Predicated region
        $region13: #{tpu_custom_call.1} parent=11 // pred_check
          %p142 = pneg %p57
        $region14: #{tpu_custom_call.1} parent=11 // pred_check_branch
          %144 = sbr.rel (%p142) target = $region16
        $region15: #{tpu_custom_call.1} parent=11 // pred_region
          %s146 = ssub.s32 128, 128
          %147 = vsyncadd [#allocation7], %s146
          %s148 = smul.addr %s28, 128
          %s149 = scalar_lea.hbm %s2, %s148
          %s151 = sshll.u32 [#allocation6], 4
          %s152 = int_to_ptr.vmem [resolvable:$true] %s151
          %154 = dma.hbm_to_vmem [thread:$0]  %s149, 128, %s152, [#allocation7]
        $region16: #{tpu_custom_call.1} parent=11 // pred_fallthru
          _
        // Predicated region
        $region17: #{tpu_custom_call.1} parent=11 // pred_check
          %p155 = pneg %p78
        $region18: #{tpu_custom_call.1} parent=11 // pred_check_branch
          %157 = sbr.rel (%p155) target = $region20
        $region19: #{tpu_custom_call.1} parent=11 // pred_region
          _
        $region20: #{tpu_custom_call.1} parent=11 // pred_fallthru
          _
        // Predicated region
        $region21: #{tpu_custom_call.1} parent=11 // pred_check
          %p158 = pneg %p99
        $region22: #{tpu_custom_call.1} parent=11 // pred_check_branch
          %160 = sbr.rel (%p158) target = $region24
        $region23: #{tpu_custom_call.1} parent=11 // pred_region
          _
        $region24: #{tpu_custom_call.1} parent=11 // pred_fallthru
          _
      $region12: #{tpu_custom_call.1} parent=5 // pred_fallthru
        _
      %p161 = scmp.lt.s32.totalorder %s19, 2
      // Predicated region
      $region25: #{tpu_custom_call.1} parent=5 // pred_check
        %p162 = pneg %p161
      $region26: #{tpu_custom_call.1} parent=5 // pred_check_branch
        %164 = sbr.rel (%p162) target = $region28
      $region27: #{tpu_custom_call.1} parent=5 // pred_region
        _
      $region28: #{tpu_custom_call.1} parent=5 // pred_fallthru
        _
      %p165 = scmp.le.s32.totalorder 1, %s19
      %p166 = scmp.lt.s32.totalorder %s19, 3
      %p167 = pnand %p165, %p166
      %p168 = pneg %p167
      // Predicated region
      $region29: #{tpu_custom_call.1} parent=5 // pred_check
        _
      $region30: #{tpu_custom_call.1} parent=5 // pred_check_branch
        %170 = sbr.rel (%p167) target = $region32
      $region31: #{tpu_custom_call.1} parent=5 // pred_region
        %s171 = ssub.s32 %s19, 1
        // Predicated region
        $region33: #{tpu_custom_call.1} parent=31 // pred_check
          %p172 = pneg %p57
        $region34: #{tpu_custom_call.1} parent=31 // pred_check_branch
          %174 = sbr.rel (%p172) target = $region36
        $region35: #{tpu_custom_call.1} parent=31 // pred_region
          %175 = dma.done [#allocation7], 128
        $region36: #{tpu_custom_call.1} parent=31 // pred_fallthru
          _
        %p176 = pneg %p57
        %p177 = pneg %p54
        %p178 = pneg %p78
        %p179 = pneg %p75
        %p180 = pneg %p99
        %p181 = pneg %p96
        %p182 = pneg %p127
        %p183 = pneg %p124
        %s184 = sand.u32 %s114, 1
        %s185 = scalar_lea.sflag [#allocation8], %s184
        %s186 = sand.u32 %s114, 1
        %s187 = smul.addr %s186, 8
        %s188 = scalar_lea.vmem [#allocation9], %s187
        %s189 = sadd.s32 %s29, %s28
        %s190 = sand.u32 %s29, 1
        %p191 = scmp.eq.s32.totalorder %s29, 0
        // Predicated region
        $region37: #{tpu_custom_call.1} parent=31 // pred_check
          %p192 = pneg %p191
        $region38: #{tpu_custom_call.1} parent=31 // pred_check_branch
          %194 = sbr.rel (%p192) target = $region40
        $region39: #{tpu_custom_call.1} parent=31 // pred_region
          %s195 = smul.u32 %s28, 8
          %s196 = sld [smem:[#allocation5 + %s195]]
          %s197 = smul.addr %s196, 16
          %s198 = scalar_lea.hbm %s1, %s197
          // Predicated region
          $region41: #{tpu_custom_call.1} parent=39 // pred_check
            _
          $region42: #{tpu_custom_call.1} parent=39 // pred_check_branch
            %200 = sbr.rel target = $region44
          $region43: #{tpu_custom_call.1} parent=39 // pred_region
            %201 = sst [smem:[#allocation12]] [#allocation11]
            %202 = sst [smem:[#allocation13]] [#allocation10]
          $region44: #{tpu_custom_call.1} parent=39 // pred_fallthru
            _
          %204 = shalt.err (0)
          %s206 = sshll.u32 [#allocation2], 4
          %s207 = int_to_ptr.vmem [resolvable:$true] %s206
          %209 = dma.hbm_to_vmem [thread:$0]  %s198, 16, %s207, [#allocation3]
          %s210 = sadd.s32 %s195, 1
          %s211 = sld [smem:[#allocation5 + %s210]]
          %s212 = smul.addr %s211, 16
          %s213 = scalar_lea.hbm %s1, %s212
          %s214 = scalar_lea.vmem [#allocation2], 1
          // Predicated region
          $region45: #{tpu_custom_call.1} parent=39 // pred_check
            _
          $region46: #{tpu_custom_call.1} parent=39 // pred_check_branch
            %216 = sbr.rel target = $region48
          $region47: #{tpu_custom_call.1} parent=39 // pred_region
            %217 = sst [smem:[#allocation12]] [#allocation15]
            %218 = sst [smem:[#allocation13]] [#allocation14]
          $region48: #{tpu_custom_call.1} parent=39 // pred_fallthru
            _
          %220 = shalt.err (0)
          %s222 = sshll.u32 %s214, 4
          %s223 = int_to_ptr.vmem [resolvable:$true] %s222
          %225 = dma.hbm_to_vmem [thread:$0]  %s213, 16, %s223, [#allocation3]
          %s226 = sadd.s32 %s195, 2
          %s227 = sld [smem:[#allocation5 + %s226]]
          %s228 = smul.addr %s227, 16
          %s229 = scalar_lea.hbm %s1, %s228
          %s230 = scalar_lea.vmem [#allocation2], 2
          // Predicated region
          $region49: #{tpu_custom_call.1} parent=39 // pred_check
            _
          $region50: #{tpu_custom_call.1} parent=39 // pred_check_branch
            %232 = sbr.rel target = $region52
          $region51: #{tpu_custom_call.1} parent=39 // pred_region
            %233 = sst [smem:[#allocation12]] [#allocation17]
            %234 = sst [smem:[#allocation13]] [#allocation16]
          $region52: #{tpu_custom_call.1} parent=39 // pred_fallthru
            _
          %236 = shalt.err (0)
          %s238 = sshll.u32 %s230, 4
          %s239 = int_to_ptr.vmem [resolvable:$true] %s238
          %241 = dma.hbm_to_vmem [thread:$0]  %s229, 16, %s239, [#allocation3]
          %s242 = sadd.s32 %s195, 3
          %s243 = sld [smem:[#allocation5 + %s242]]
          %s244 = smul.addr %s243, 16
          %s245 = scalar_lea.hbm %s1, %s244
          %s246 = scalar_lea.vmem [#allocation2], 3
          // Predicated region
          $region53: #{tpu_custom_call.1} parent=39 // pred_check
            _
          $region54: #{tpu_custom_call.1} parent=39 // pred_check_branch
            %248 = sbr.rel target = $region56
          $region55: #{tpu_custom_call.1} parent=39 // pred_region
            %249 = sst [smem:[#allocation12]] [#allocation19]
            %250 = sst [smem:[#allocation13]] [#allocation18]
          $region56: #{tpu_custom_call.1} parent=39 // pred_fallthru
            _
          %252 = shalt.err (0)
          %s254 = sshll.u32 %s246, 4
          %s255 = int_to_ptr.vmem [resolvable:$true] %s254
          %257 = dma.hbm_to_vmem [thread:$0]  %s245, 16, %s255, [#allocation3]
          %s258 = sadd.s32 %s195, 4
          %s259 = sld [smem:[#allocation5 + %s258]]
          %s260 = smul.addr %s259, 16
          %s261 = scalar_lea.hbm %s1, %s260
          %s262 = scalar_lea.vmem [#allocation2], 4
          // Predicated region
          $region57: #{tpu_custom_call.1} parent=39 // pred_check
            _
          $region58: #{tpu_custom_call.1} parent=39 // pred_check_branch
            %264 = sbr.rel target = $region60
          $region59: #{tpu_custom_call.1} parent=39 // pred_region
            %265 = sst [smem:[#allocation12]] [#allocation21]
            %266 = sst [smem:[#allocation13]] [#allocation20]
          $region60: #{tpu_custom_call.1} parent=39 // pred_fallthru
            _
          %268 = shalt.err (0)
          %s270 = sshll.u32 %s262, 4
          %s271 = int_to_ptr.vmem [resolvable:$true] %s270
          %273 = dma.hbm_to_vmem [thread:$0]  %s261, 16, %s271, [#allocation3]
          %s274 = sadd.s32 %s195, 5
          %s275 = sld [smem:[#allocation5 + %s274]]
          %s276 = smul.addr %s275, 16
          %s277 = scalar_lea.hbm %s1, %s276
          %s278 = scalar_lea.vmem [#allocation2], 5
          // Predicated region
          $region61: #{tpu_custom_call.1} parent=39 // pred_check
            _
          $region62: #{tpu_custom_call.1} parent=39 // pred_check_branch
            %280 = sbr.rel target = $region64
          $region63: #{tpu_custom_call.1} parent=39 // pred_region
            %281 = sst [smem:[#allocation12]] [#allocation23]
            %282 = sst [smem:[#allocation13]] [#allocation22]
          $region64: #{tpu_custom_call.1} parent=39 // pred_fallthru
            _
          %284 = shalt.err (0)
          %s286 = sshll.u32 %s278, 4
          %s287 = int_to_ptr.vmem [resolvable:$true] %s286
          %289 = dma.hbm_to_vmem [thread:$0]  %s277, 16, %s287, [#allocation3]
          %s290 = sadd.s32 %s195, 6
          %s291 = sld [smem:[#allocation5 + %s290]]
          %s292 = smul.addr %s291, 16
          %s293 = scalar_lea.hbm %s1, %s292
          %s294 = scalar_lea.vmem [#allocation2], 6
          // Predicated region
          $region65: #{tpu_custom_call.1} parent=39 // pred_check
            _
          $region66: #{tpu_custom_call.1} parent=39 // pred_check_branch
            %296 = sbr.rel target = $region68
          $region67: #{tpu_custom_call.1} parent=39 // pred_region
            %297 = sst [smem:[#allocation12]] [#allocation25]
            %298 = sst [smem:[#allocation13]] [#allocation24]
          $region68: #{tpu_custom_call.1} parent=39 // pred_fallthru
            _
          %300 = shalt.err (0)
          %s302 = sshll.u32 %s294, 4
          %s303 = int_to_ptr.vmem [resolvable:$true] %s302
          %305 = dma.hbm_to_vmem [thread:$0]  %s293, 16, %s303, [#allocation3]
          %s306 = sadd.s32 %s195, 7
          %s307 = sld [smem:[#allocation5 + %s306]]
          %s308 = smul.addr %s307, 16
          %s309 = scalar_lea.hbm %s1, %s308
          %s310 = scalar_lea.vmem [#allocation2], 7
          // Predicated region
          $region69: #{tpu_custom_call.1} parent=39 // pred_check
            _
          $region70: #{tpu_custom_call.1} parent=39 // pred_check_branch
            %312 = sbr.rel target = $region72
          $region71: #{tpu_custom_call.1} parent=39 // pred_region
            %313 = sst [smem:[#allocation12]] [#allocation27]
            %314 = sst [smem:[#allocation13]] [#allocation26]
          $region72: #{tpu_custom_call.1} parent=39 // pred_fallthru
            _
          %316 = shalt.err (0)
          %s318 = sshll.u32 %s310, 4
          %s319 = int_to_ptr.vmem [resolvable:$true] %s318
          %321 = dma.hbm_to_vmem [thread:$0]  %s309, 16, %s319, [#allocation3]
        $region40: #{tpu_custom_call.1} parent=31 // pred_fallthru
          _
        %s322 = sadd.s32 %s29, 1
        %p323 = scmp.lt.s32.totalorder %s322, 2
        // Predicated region
        $region73: #{tpu_custom_call.1} parent=31 // pred_check
          %p324 = pneg %p323
        $region74: #{tpu_custom_call.1} parent=31 // pred_check_branch
          %326 = sbr.rel (%p324) target = $region76
        $region75: #{tpu_custom_call.1} parent=31 // pred_region
          %s327 = smul.u32 %s322, 8
          %s328 = smul.u32 %s28, 8
          %s329 = sadd.s32 %s327, %s328
          %s330 = ssub.s32 1, %s190
          %s331 = sld [smem:[#allocation5 + %s329]]
          %s332 = smul.addr %s331, 16
          %s333 = scalar_lea.hbm %s1, %s332
          %s334 = smul.u32 %s330, 8
          %s335 = scalar_lea.vmem [#allocation2], %s334
          %s336 = scalar_lea.sflag [#allocation3], %s330
          // Predicated region
          $region77: #{tpu_custom_call.1} parent=75 // pred_check
            _
          $region78: #{tpu_custom_call.1} parent=75 // pred_check_branch
            %338 = sbr.rel target = $region80
          $region79: #{tpu_custom_call.1} parent=75 // pred_region
            %339 = sst [smem:[#allocation12]] [#allocation29]
            %340 = sst [smem:[#allocation13]] [#allocation28]
          $region80: #{tpu_custom_call.1} parent=75 // pred_fallthru
            _
          %342 = shalt.err (0)
          %s344 = sshll.u32 %s335, 4
          %s345 = int_to_ptr.vmem [resolvable:$true] %s344
          %347 = dma.hbm_to_vmem [thread:$0]  %s333, 16, %s345, %s336
          %s348 = sadd.s32 %s329, 1
          %s349 = sld [smem:[#allocation5 + %s348]]
          %s350 = smul.addr %s349, 16
          %s351 = scalar_lea.hbm %s1, %s350
          %s352 = sadd.s32 1, %s334
          %s353 = scalar_lea.vmem [#allocation2], %s352
          // Predicated region
          $region81: #{tpu_custom_call.1} parent=75 // pred_check
            _
          $region82: #{tpu_custom_call.1} parent=75 // pred_check_branch
            %355 = sbr.rel target = $region84
          $region83: #{tpu_custom_call.1} parent=75 // pred_region
            %356 = sst [smem:[#allocation12]] [#allocation31]
            %357 = sst [smem:[#allocation13]] [#allocation30]
          $region84: #{tpu_custom_call.1} parent=75 // pred_fallthru
            _
          %359 = shalt.err (0)
          %s361 = sshll.u32 %s353, 4
          %s362 = int_to_ptr.vmem [resolvable:$true] %s361
          %364 = dma.hbm_to_vmem [thread:$0]  %s351, 16, %s362, %s336
          %s365 = sadd.s32 %s329, 2
          %s366 = sld [smem:[#allocation5 + %s365]]
          %s367 = smul.addr %s366, 16
          %s368 = scalar_lea.hbm %s1, %s367
          %s369 = sadd.s32 2, %s334
          %s370 = scalar_lea.vmem [#allocation2], %s369
          // Predicated region
          $region85: #{tpu_custom_call.1} parent=75 // pred_check
            _
          $region86: #{tpu_custom_call.1} parent=75 // pred_check_branch
            %372 = sbr.rel target = $region88
          $region87: #{tpu_custom_call.1} parent=75 // pred_region
            %373 = sst [smem:[#allocation12]] [#allocation33]
            %374 = sst [smem:[#allocation13]] [#allocation32]
          $region88: #{tpu_custom_call.1} parent=75 // pred_fallthru
            _
          %376 = shalt.err (0)
          %s378 = sshll.u32 %s370, 4
          %s379 = int_to_ptr.vmem [resolvable:$true] %s378
          %381 = dma.hbm_to_vmem [thread:$0]  %s368, 16, %s379, %s336
          %s382 = sadd.s32 %s329, 3
          %s383 = sld [smem:[#allocation5 + %s382]]
          %s384 = smul.addr %s383, 16
          %s385 = scalar_lea.hbm %s1, %s384
          %s386 = sadd.s32 3, %s334
          %s387 = scalar_lea.vmem [#allocation2], %s386
          // Predicated region
          $region89: #{tpu_custom_call.1} parent=75 // pred_check
            _
          $region90: #{tpu_custom_call.1} parent=75 // pred_check_branch
            %389 = sbr.rel target = $region92
          $region91: #{tpu_custom_call.1} parent=75 // pred_region
            %390 = sst [smem:[#allocation12]] [#allocation35]
            %391 = sst [smem:[#allocation13]] [#allocation34]
          $region92: #{tpu_custom_call.1} parent=75 // pred_fallthru
            _
          %393 = shalt.err (0)
          %s395 = sshll.u32 %s387, 4
          %s396 = int_to_ptr.vmem [resolvable:$true] %s395
          %398 = dma.hbm_to_vmem [thread:$0]  %s385, 16, %s396, %s336
          %s399 = sadd.s32 %s329, 4
          %s400 = sld [smem:[#allocation5 + %s399]]
          %s401 = smul.addr %s400, 16
          %s402 = scalar_lea.hbm %s1, %s401
          %s403 = sadd.s32 4, %s334
          %s404 = scalar_lea.vmem [#allocation2], %s403
          // Predicated region
          $region93: #{tpu_custom_call.1} parent=75 // pred_check
            _
          $region94: #{tpu_custom_call.1} parent=75 // pred_check_branch
            %406 = sbr.rel target = $region96
          $region95: #{tpu_custom_call.1} parent=75 // pred_region
            %407 = sst [smem:[#allocation12]] [#allocation37]
            %408 = sst [smem:[#allocation13]] [#allocation36]
          $region96: #{tpu_custom_call.1} parent=75 // pred_fallthru
            _
          %410 = shalt.err (0)
          %s412 = sshll.u32 %s404, 4
          %s413 = int_to_ptr.vmem [resolvable:$true] %s412
          %415 = dma.hbm_to_vmem [thread:$0]  %s402, 16, %s413, %s336
          %s416 = sadd.s32 %s329, 5
          %s417 = sld [smem:[#allocation5 + %s416]]
          %s418 = smul.addr %s417, 16
          %s419 = scalar_lea.hbm %s1, %s418
          %s420 = sadd.s32 5, %s334
          %s421 = scalar_lea.vmem [#allocation2], %s420
          // Predicated region
          $region97: #{tpu_custom_call.1} parent=75 // pred_check
            _
          $region98: #{tpu_custom_call.1} parent=75 // pred_check_branch
            %423 = sbr.rel target = $region100
          $region99: #{tpu_custom_call.1} parent=75 // pred_region
            %424 = sst [smem:[#allocation12]] [#allocation39]
            %425 = sst [smem:[#allocation13]] [#allocation38]
          $region100: #{tpu_custom_call.1} parent=75 // pred_fallthru
            _
          %427 = shalt.err (0)
          %s429 = sshll.u32 %s421, 4
          %s430 = int_to_ptr.vmem [resolvable:$true] %s429
          %432 = dma.hbm_to_vmem [thread:$0]  %s419, 16, %s430, %s336
          %s433 = sadd.s32 %s329, 6
          %s434 = sld [smem:[#allocation5 + %s433]]
          %s435 = smul.addr %s434, 16
          %s436 = scalar_lea.hbm %s1, %s435
          %s437 = sadd.s32 6, %s334
          %s438 = scalar_lea.vmem [#allocation2], %s437
          // Predicated region
          $region101: #{tpu_custom_call.1} parent=75 // pred_check
            _
          $region102: #{tpu_custom_call.1} parent=75 // pred_check_branch
            %440 = sbr.rel target = $region104
          $region103: #{tpu_custom_call.1} parent=75 // pred_region
            %441 = sst [smem:[#allocation12]] [#allocation41]
            %442 = sst [smem:[#allocation13]] [#allocation40]
          $region104: #{tpu_custom_call.1} parent=75 // pred_fallthru
            _
          %444 = shalt.err (0)
          %s446 = sshll.u32 %s438, 4
          %s447 = int_to_ptr.vmem [resolvable:$true] %s446
          %449 = dma.hbm_to_vmem [thread:$0]  %s436, 16, %s447, %s336
          %s450 = sadd.s32 %s329, 7
          %s451 = sld [smem:[#allocation5 + %s450]]
          %s452 = smul.addr %s451, 16
          %s453 = scalar_lea.hbm %s1, %s452
          %s454 = sadd.s32 7, %s334
          %s455 = scalar_lea.vmem [#allocation2], %s454
          // Predicated region
          $region105: #{tpu_custom_call.1} parent=75 // pred_check
            _
          $region106: #{tpu_custom_call.1} parent=75 // pred_check_branch
            %457 = sbr.rel target = $region108
          $region107: #{tpu_custom_call.1} parent=75 // pred_region
            %458 = sst [smem:[#allocation12]] [#allocation43]
            %459 = sst [smem:[#allocation13]] [#allocation42]
          $region108: #{tpu_custom_call.1} parent=75 // pred_fallthru
            _
          %461 = shalt.err (0)
          %s463 = sshll.u32 %s455, 4
          %s464 = int_to_ptr.vmem [resolvable:$true] %s463
          %466 = dma.hbm_to_vmem [thread:$0]  %s453, 16, %s464, %s336
        $region76: #{tpu_custom_call.1} parent=31 // pred_fallthru
          _
        %s467 = scalar_lea.sflag [#allocation3], %s190
        %469 = dma.done %s467, 16
        %471 = dma.done %s467, 16
        %473 = dma.done %s467, 16
        %475 = dma.done %s467, 16
        %477 = dma.done %s467, 16
        %479 = dma.done %s467, 16
        %481 = dma.done %s467, 16
        %483 = dma.done %s467, 16
        %s484 = smul.u32 %s190, 8
        %s485 = scalar_lea.vmem [#allocation2], %s484
        %v486 = vld [vmem:[%s485] sm:$0xff]
        %v487 = vld [vmem:[#allocation6] sm:$0xff]
        %v488 = vadd.f32 %v486, %v487
        %489 = vadd.xlane.f32.xlu0 %v488
        %v490 = vpop.xlane.xlu0 %489
        %v491 = vmul.f32 %v488, %v488
        %492 = vadd.xlane.f32.xlu0 %v491
        %v493 = vpop.xlane.xlu0 %492
        %v494 = vmul.f32 %v490, 0.0078125
        %v495 = vmul.f32 %v493, 0.0078125
        %v496 = vmul.f32 %v494, %v494
        %v497 = vsub.f32 %v495, %v496
        %v498 = vmax.f32 %v497, 0.0
        %v499 = vadd.f32 %v498, 1e-12
        %v500 = vrsqrt.pop %v499
        %v501 = vsub.f32 %v488, %v494
        %v502 = vmul.f32 %v501, %v500
        %v503 = vld [vmem:[%s3] sm:$0x1]
        %v505 = vlaneseq
        %v506 = vshrl.u32 %v505, 7
        %v507 = vsub.s32 0, %v506
        %v508 = vrot.slane %v503, %v507
        %v510 = vmul.f32 %v502, %v508
        %v511 = vld [vmem:[%s4] sm:$0x1]
        %v513 = vlaneseq
        %v514 = vshrl.u32 %v513, 7
        %v515 = vsub.s32 0, %v514
        %v516 = vrot.slane %v511, %v515
        %v518 = vadd.f32 %v510, %v516
        %519 = vst [vmem:[%s188] sm:$0xff] %v518
        %s520 = sand.u32 %s114, 1
        %s521 = scalar_lea.sflag [#allocation8], %s520
        %s522 = sand.u32 %s114, 1
        %s523 = smul.addr %s522, 8
        %s524 = scalar_lea.vmem [#allocation9], %s523
        // Predicated region
        $region109: #{tpu_custom_call.1} parent=31 // pred_check
          %p525 = pneg %p124
        $region110: #{tpu_custom_call.1} parent=31 // pred_check_branch
          %527 = sbr.rel (%p525) target = $region112
        $region111: #{tpu_custom_call.1} parent=31 // pred_region
          %s528 = sadd.s32 %s29, %s28
          %s530 = ssub.s32 128, 128
          %531 = vsyncadd %s521, %s530
          %s532 = smul.addr %s528, 128
          %s533 = scalar_lea.hbm %s5, %s532
          %s535 = sshll.u32 %s524, 4
          %s536 = int_to_ptr.vmem [resolvable:$true] %s535
          %538 = dma.vmem_to_hbm [thread:$0]  %s536, 128, %s533, %s521
        $region112: #{tpu_custom_call.1} parent=31 // pred_fallthru
          _
      $region32: #{tpu_custom_call.1} parent=5 // pred_fallthru
        _
      %p539 = scmp.le.s32.totalorder 2, %s19
      // Predicated region
      $region113: #{tpu_custom_call.1} parent=5 // pred_check
        %p540 = pneg %p539
      $region114: #{tpu_custom_call.1} parent=5 // pred_check_branch
        %542 = sbr.rel (%p540) target = $region116
      $region115: #{tpu_custom_call.1} parent=5 // pred_region
        %s543 = ssub.s32 %s19, 2
        // Predicated region
        $region117: #{tpu_custom_call.1} parent=115 // pred_check
          %p544 = pneg %p130
        $region118: #{tpu_custom_call.1} parent=115 // pred_check_branch
          %546 = sbr.rel (%p544) target = $region120
        $region119: #{tpu_custom_call.1} parent=115 // pred_region
          %s547 = sand.u32 %s115, 1
          %s548 = scalar_lea.sflag [#allocation8], %s547
          %s549 = sand.u32 %s115, 1
          %s550 = smul.addr %s549, 8
          %s551 = scalar_lea.vmem [#allocation9], %s550
          %552 = dma.done %s548, 128
        $region120: #{tpu_custom_call.1} parent=115 // pred_fallthru
          _
      $region116: #{tpu_custom_call.1} parent=5 // pred_fallthru
        _
    $region6: #{tpu_custom_call.1} parent=1 // loop_footer
      %s23 = sadd.s32 1, %s19
    $region7: #{tpu_custom_call.1} parent=1 // loop_footer_branch
      %18 = sbr.rel target = $region3
    $region8: #{tpu_custom_call.1} parent=1 // loop_exit
      _
    %553 = vsyncpa [#allocation7], 1
    %s554 = scalar_lea.sflag [#allocation7], 1
    %555 = vsyncpa %s554, 1
    %556 = vsyncpa [#allocation8], 1
    %s557 = scalar_lea.sflag [#allocation8], 1
    %558 = vsyncpa %s557, 1
  %559 = vsyncmov [#allocation3]
  %s560 = vpop.sfrf %559
  %p561 = scmp.eq.s32.totalorder %s560, 0
  %p562 = pneg %p561
  %564 = shalt.err (%p562)
  %s565 = scalar_lea.sflag [#allocation3], 1
  %566 = vsyncmov %s565
  %s567 = vpop.sfrf %566
  %p568 = scmp.eq.s32.totalorder %s567, 0
  %p569 = pneg %p568
  %571 = shalt.err (%p569)

</llo_original>
